<compile_context>
chip_gen: v7x
topology: tpu7x:2x2x1
jax: 0.10.0
libtpu: 0.0.40
codegen_flags: <defaults>
</compile_context>

<pallas_src>
import jax
import jax.numpy as jnp
from jax import lax
from jax.experimental import pallas as pl
from jax.experimental.pallas import tpu as pltpu


def _round_up(x, m):
    return ((x + m - 1) // m) * m


def _pick_tile(s, max_tile=256):
    """Largest tile <= max_tile that divides s and is a multiple of 8."""
    for t in (256, 128, 64, 32, 16, 8):
        if t <= max_tile and s % t == 0:
            return t
    return s  # fall back to full extent (always a legal block dim)


# ---------------------------------------------------------------------------
# Kernel 1: channel projections theta / phi / g (1x1x1 convs == matmuls).
# Computed once per (batch, seq-tile); outputs emitted in bf16 for the MXU.
# ---------------------------------------------------------------------------
def _proj_kernel(x_ref, wt_ref, bt_ref, wp_ref, bp_ref, wg_ref, bg_ref,
                 theta_ref, phi_ref, g_ref):
    x = x_ref[0]  # (ts, Cp) f32
    theta = jnp.dot(x, wt_ref[...], preferred_element_type=jnp.float32) + bt_ref[...]
    phi = jnp.dot(x, wp_ref[...], preferred_element_type=jnp.float32) + bp_ref[...]
    g = jnp.dot(x, wg_ref[...], preferred_element_type=jnp.float32) + bg_ref[...]
    theta_ref[0] = theta.astype(theta_ref.dtype)
    phi_ref[0] = phi.astype(phi_ref.dtype)
    g_ref[0] = g.astype(g_ref.dtype)


# ---------------------------------------------------------------------------
# Kernel 2: flash-style online softmax over key tiles + fused epilogue
# (conv_out with BN folded in, plus residual add).
# ---------------------------------------------------------------------------
def _flash_attn_kernel(theta_ref, phi_ref, g_ref, x_ref, wo_ref, bo_ref,
                       o_ref, m_sc, l_sc, acc_sc):
    ki = pl.program_id(2)

    @pl.when(ki == 0)
    def _():
        m_sc[...] = jnp.full_like(m_sc, -jnp.inf)
        l_sc[...] = jnp.zeros_like(l_sc)
        acc_sc[...] = jnp.zeros_like(acc_sc)

    # Logits: contract channel axis of theta and phi directly (no transpose).
    # 1/sqrt(dim_inner) is already folded into the theta weights/bias.
    s = lax.dot_general(
        theta_ref[0], phi_ref[0],
        dimension_numbers=(((1,), (1,)), ((), ())),
        preferred_element_type=jnp.float32,
    )  # (tq, tk) f32

    m_prev = m_sc[...]
    m_new = jnp.maximum(m_prev, jnp.max(s, axis=-1, keepdims=True))
    alpha = jnp.exp(m_prev - m_new)
    p = jnp.exp(s - m_new)
    l_sc[...] = alpha * l_sc[...] + jnp.sum(p, axis=-1, keepdims=True)
    acc_sc[...] = alpha * acc_sc[...] + jnp.dot(
        p.astype(g_ref.dtype), g_ref[0], preferred_element_type=jnp.float32)
    m_sc[...] = m_new

    @pl.when(ki == pl.num_programs(2) - 1)
    def _():
        attn_out = acc_sc[...] * pl.reciprocal(l_sc[...], approx=True)  # (tq, Cip)
        # conv_out with eval-mode BatchNorm folded into wo/bo.
        p_out = jnp.dot(attn_out, wo_ref[...],
                        preferred_element_type=jnp.float32) + bo_ref[...]
        o_ref[0] = x_ref[0] + p_out  # residual


def nonlocal_forward(x_ncthw, params, *, dim_inner, norm_eps=1e-5,
                     max_seq_tile=256):
    """x_ncthw: (N, C, T, H, W) float32 — PyTorch layout."""
    N, C, T, H, W = x_ncthw.shape
    S = T * H * W
    (wt, bt, wp, bp, wg, bg, wo, bo, gamma, beta, mean, var) = params

    # --- wrapper-side constant folding -------------------------------------
    # Fold the softmax temperature into the theta projection.
    sc = dim_inner ** (-0.5)
    wt_f = wt * sc
    bt_f = bt * sc
    # Fold eval-mode BatchNorm affine into conv_out.
    s_bn = gamma * lax.rsqrt(var + norm_eps)        # (1, C)
    wo_f = wo * s_bn                                 # (Ci, C) * (1, C)
    bo_f = (bo - mean) * s_bn + beta                 # (1, C)

    # --- lane-dense padding of channel axes ---------------------------------
    Cp = _round_up(C, 128)
    Cip = _round_up(dim_inner, 128)

    x_sc = jnp.transpose(x_ncthw.reshape(N, C, S), (0, 2, 1)).astype(jnp.float32)
    x_sc = jnp.pad(x_sc, ((0, 0), (0, 0), (0, Cp - C)))

    def pad2(a, rows, cols):
        return jnp.pad(a, ((0, rows - a.shape[0]), (0, cols - a.shape[1])))

    wt_p = pad2(wt_f, Cp, Cip)
    wp_p = pad2(wp, Cp, Cip)
    wg_p = pad2(wg, Cp, Cip)
    bt_p = pad2(bt_f, 1, Cip)
    bp_p = pad2(bp, 1, Cip)
    bg_p = pad2(bg, 1, Cip)
    wo_p = pad2(wo_f, Cip, Cp)
    bo_p = pad2(bo_f, 1, Cp)

    cparams = pltpu.CompilerParams(
        dimension_semantics=("parallel", "parallel"),
        vmem_limit_bytes=48 * 1024 * 1024,  # explicit, with headroom for v7x (64 MiB)
    )

    # --- pass 1: projections -------------------------------------------------
    ts = _pick_tile(S, max_seq_tile)
    full2d = lambda a: pl.BlockSpec(a.shape, lambda n, si: (0, 0))
    theta, phi, g = pl.pallas_call(
        _proj_kernel,
        out_shape=[jax.ShapeDtypeStruct((N, S, Cip), jnp.bfloat16)] * 3,
        grid_spec=pltpu.PrefetchScalarGridSpec(
            num_scalar_prefetch=0,
            grid=(N, S // ts),
            in_specs=[
                pl.BlockSpec((1, ts, Cp), lambda n, si: (n, si, 0)),
                full2d(wt_p), full2d(bt_p),
                full2d(wp_p), full2d(bp_p),
                full2d(wg_p), full2d(bg_p),
            ],
            out_specs=[pl.BlockSpec((1, ts, Cip), lambda n, si: (n, si, 0))] * 3,
        ),
        compiler_params=cparams,
    )(x_sc, wt_p, bt_p, wp_p, bp_p, wg_p, bg_p)

    # --- pass 2: flash attention + fused conv_out/BN/residual ---------------
    tq = _pick_tile(S, max_seq_tile)
    tk = _pick_tile(S, max_seq_tile)
    nq, nk = S // tq, S // tk

    out_sc = pl.pallas_call(
        _flash_attn_kernel,
        out_shape=jax.ShapeDtypeStruct((N, S, Cp), jnp.float32),
        grid_spec=pltpu.PrefetchScalarGridSpec(
            num_scalar_prefetch=0,
            grid=(N, nq, nk),
            in_specs=[
                pl.BlockSpec((1, tq, Cip), lambda n, qi, ki: (n, qi, 0)),  # theta
                pl.BlockSpec((1, tk, Cip), lambda n, qi, ki: (n, ki, 0)),  # phi
                pl.BlockSpec((1, tk, Cip), lambda n, qi, ki: (n, ki, 0)),  # g
                pl.BlockSpec((1, tq, Cp), lambda n, qi, ki: (n, qi, 0)),   # x (residual)
                pl.BlockSpec(wo_p.shape, lambda n, qi, ki: (0, 0)),        # conv_out W (BN folded)
                pl.BlockSpec(bo_p.shape, lambda n, qi, ki: (0, 0)),        # conv_out b (BN folded)
            ],
            out_specs=pl.BlockSpec((1, tq, Cp), lambda n, qi, ki: (n, qi, 0)),
            scratch_shapes=[
                pltpu.VMEM((tq, 1), jnp.float32),    # running max
                pltpu.VMEM((tq, 1), jnp.float32),    # running denom
                pltpu.VMEM((tq, Cip), jnp.float32),  # running accumulator
            ],
        ),
        compiler_params=pltpu.CompilerParams(
            dimension_semantics=("parallel", "parallel", "arbitrary"),
            vmem_limit_bytes=48 * 1024 * 1024,
        ),
    )(theta, phi, g, x_sc, wo_p, bo_p)

    # glue: drop channel padding, (N, S, C) -> NCTHW
    out_sc = out_sc[:, :, :C]
    return jnp.transpose(out_sc, (0, 2, 1)).reshape(N, C, T, H, W)


def nonlocal_reference(x_ncthw, params, *, dim_inner, norm_eps=1e-5):
    """Pure-JAX reference mirroring the PyTorch forward (eval-mode BN)."""
    (wt, bt, wp, bp, wg, bg, wo, bo, gamma, beta, mean, var) = params
    N, C, T, H, W = x_ncthw.shape
    S = T * H * W
    x_flat = x_ncthw.reshape(N, C, S).astype(jnp.float32)  # (N, C, S)

    # conv weights stored as (C_in, C_out)
    theta = jnp.einsum('io,nis->nos', wt, x_flat) + bt.reshape(1, -1, 1)
    phi = jnp.einsum('io,nis->nos', wp, x_flat) + bp.reshape(1, -1, 1)
    g = jnp.einsum('io,nis->nos', wg, x_flat) + bg.reshape(1, -1, 1)

    theta_phi = jnp.einsum('nct,ncp->ntp', theta, phi)
    theta_phi = theta_phi * (dim_inner ** (-0.5))
    theta_phi = jax.nn.softmax(theta_phi, axis=2)
    theta_phi_g = jnp.einsum('ntg,ncg->nct', theta_phi, g)  # (N, Ci, S)

    p = jnp.einsum('io,nis->nos', wo, theta_phi_g) + bo.reshape(1, -1, 1)  # (N, C, S)
    inv_std = lax.rsqrt(var.reshape(1, -1, 1) + norm_eps)
    p = (p - mean.reshape(1, -1, 1)) * inv_std * gamma.reshape(1, -1, 1) \
        + beta.reshape(1, -1, 1)
    return x_ncthw + p.reshape(N, C, T, H, W)


def make_params(key, dim, dim_inner):
    """Deterministic synthetic parameters (shapes per Nonlocal.__init__)."""
    ks = jax.random.split(key, 8)
    scale_in = 0.1
    wt = scale_in * jax.random.normal(ks[0], (dim, dim_inner), jnp.float32)
    bt = scale_in * jax.random.normal(ks[1], (1, dim_inner), jnp.float32)
    wp = scale_in * jax.random.normal(ks[2], (dim, dim_inner), jnp.float32)
    bp = scale_in * jax.random.normal(ks[3], (1, dim_inner), jnp.float32)
    wg = scale_in * jax.random.normal(ks[4], (dim, dim_inner), jnp.float32)
    bg = scale_in * jax.random.normal(ks[5], (1, dim_inner), jnp.float32)
    wo = scale_in * jax.random.normal(ks[6], (dim_inner, dim), jnp.float32)
    bo = scale_in * jax.random.normal(ks[7], (1, dim), jnp.float32)
    # BatchNorm3d (eval): deterministic, non-trivial running stats / affine.
    gamma = 1.0 + 0.05 * jnp.arange(dim, dtype=jnp.float32).reshape(1, dim)
    beta = 0.02 * jnp.arange(dim, dtype=jnp.float32).reshape(1, dim)
    mean = 0.01 * jnp.arange(dim, dtype=jnp.float32).reshape(1, dim)
    var = 1.0 + 0.03 * jnp.arange(dim, dtype=jnp.float32).reshape(1, dim)
    return (wt, bt, wp, bp, wg, bg, wo, bo, gamma, beta, mean, var)


if __name__ == "__main__":
    N, dim, dim_inner = 2, 32, 16
    T, H, W = 4, 8, 16   # S = T*H*W = 512 -> 2 query tiles x 2 key tiles of 256

    key = jax.random.PRNGKey(0)
    kx, kp = jax.random.split(key)
    x = jax.random.normal(kx, (N, dim, T, H, W), jnp.float32)
    params = make_params(kp, dim, dim_inner)

    y = nonlocal_forward(x, params, dim_inner=dim_inner)
    y = jax.block_until_ready(y)

    y_ref = nonlocal_reference(x, params, dim_inner=dim_inner)
    assert y.shape == x.shape
    # Tolerance accounts for bf16 MXU inputs (f32 accumulation) in the
    # attention matmuls; outputs are O(1), so this still catches logic bugs.
    assert jnp.allclose(y, y_ref, atol=2e-2, rtol=2e-2), \
        "Pallas output mismatch vs reference"

    print("KERNEL_OK")
</pallas_src>

<mosaic_0001>
module attributes {stable_mosaic.version = 11 : i64} {
  func.func @_proj_kernel(%arg0: i32, %arg1: i32, %arg2: memref<1x256x128xf32, #tpu.memory_space<vmem>>, %arg3: memref<128x128xf32, #tpu.memory_space<vmem>>, %arg4: memref<1x128xf32, #tpu.memory_space<vmem>>, %arg5: memref<128x128xf32, #tpu.memory_space<vmem>>, %arg6: memref<1x128xf32, #tpu.memory_space<vmem>>, %arg7: memref<128x128xf32, #tpu.memory_space<vmem>>, %arg8: memref<1x128xf32, #tpu.memory_space<vmem>>, %arg9: memref<1x256x128xbf16, #tpu.memory_space<vmem>>, %arg10: memref<1x256x128xbf16, #tpu.memory_space<vmem>>, %arg11: memref<1x256x128xbf16, #tpu.memory_space<vmem>>) attributes {dimension_semantics = [#tpu.dimension_semantics<parallel>, #tpu.dimension_semantics<parallel>], iteration_bounds = array<i64: 2, 2>, scalar_prefetch = 0 : i64, scratch_operands = 0 : i64, tpu.core_type = #tpu.core_type<tc>, window_params = [{transform_indices = @transform_0, window_bounds = array<i64: 1, 256, 128>}, {pipeline_mode = #tpu.pipeline_mode<synchronous>, transform_indices = @transform_1, window_bounds = array<i64: 128, 128>}, {pipeline_mode = #tpu.pipeline_mode<synchronous>, transform_indices = @transform_2, window_bounds = array<i64: 1, 128>}, {pipeline_mode = #tpu.pipeline_mode<synchronous>, transform_indices = @transform_3, window_bounds = array<i64: 128, 128>}, {pipeline_mode = #tpu.pipeline_mode<synchronous>, transform_indices = @transform_4, window_bounds = array<i64: 1, 128>}, {pipeline_mode = #tpu.pipeline_mode<synchronous>, transform_indices = @transform_5, window_bounds = array<i64: 128, 128>}, {pipeline_mode = #tpu.pipeline_mode<synchronous>, transform_indices = @transform_6, window_bounds = array<i64: 1, 128>}, {transform_indices = @transform_7, window_bounds = array<i64: 1, 256, 128>}, {transform_indices = @transform_8, window_bounds = array<i64: 1, 256, 128>}, {transform_indices = @transform_9, window_bounds = array<i64: 1, 256, 128>}]} {
    %c0 = arith.constant 0 : index
    %c0_0 = arith.constant 0 : index
    %c0_1 = arith.constant 0 : index
    %0 = vector.load %arg2[%c0, %c0_0, %c0_1] : memref<1x256x128xf32, #tpu.memory_space<vmem>>, vector<1x256x128xf32>
    %1 = vector.shape_cast %0 : vector<1x256x128xf32> to vector<256x128xf32>
    %c0_2 = arith.constant 0 : index
    %c0_3 = arith.constant 0 : index
    %2 = vector.load %arg3[%c0_2, %c0_3] : memref<128x128xf32, #tpu.memory_space<vmem>>, vector<128x128xf32>
    %cst = arith.constant dense<0.000000e+00> : vector<256x128xf32>
    %3 = tpu.matmul %1, %2, %cst {dimension_numbers = #tpu.dot_dimension_numbers<[1], [0], [0], [1], [0, 0, 1, 1], [], []>} : vector<256x128xf32>, vector<128x128xf32>, vector<256x128xf32> -> vector<256x128xf32>
    %c0_4 = arith.constant 0 : index
    %c0_5 = arith.constant 0 : index
    %4 = vector.load %arg4[%c0_4, %c0_5] : memref<1x128xf32, #tpu.memory_space<vmem>>, vector<1x128xf32>
    %5 = vector.broadcast %4 : vector<1x128xf32> to vector<256x128xf32>
    %6 = arith.addf %3, %5 : vector<256x128xf32>
    %c0_6 = arith.constant 0 : index
    %c0_7 = arith.constant 0 : index
    %7 = vector.load %arg5[%c0_6, %c0_7] : memref<128x128xf32, #tpu.memory_space<vmem>>, vector<128x128xf32>
    %cst_8 = arith.constant dense<0.000000e+00> : vector<256x128xf32>
    %8 = tpu.matmul %1, %7, %cst_8 {dimension_numbers = #tpu.dot_dimension_numbers<[1], [0], [0], [1], [0, 0, 1, 1], [], []>} : vector<256x128xf32>, vector<128x128xf32>, vector<256x128xf32> -> vector<256x128xf32>
    %c0_9 = arith.constant 0 : index
    %c0_10 = arith.constant 0 : index
    %9 = vector.load %arg6[%c0_9, %c0_10] : memref<1x128xf32, #tpu.memory_space<vmem>>, vector<1x128xf32>
    %10 = vector.broadcast %9 : vector<1x128xf32> to vector<256x128xf32>
    %11 = arith.addf %8, %10 : vector<256x128xf32>
    %c0_11 = arith.constant 0 : index
    %c0_12 = arith.constant 0 : index
    %12 = vector.load %arg7[%c0_11, %c0_12] : memref<128x128xf32, #tpu.memory_space<vmem>>, vector<128x128xf32>
    %cst_13 = arith.constant dense<0.000000e+00> : vector<256x128xf32>
    %13 = tpu.matmul %1, %12, %cst_13 {dimension_numbers = #tpu.dot_dimension_numbers<[1], [0], [0], [1], [0, 0, 1, 1], [], []>} : vector<256x128xf32>, vector<128x128xf32>, vector<256x128xf32> -> vector<256x128xf32>
    %c0_14 = arith.constant 0 : index
    %c0_15 = arith.constant 0 : index
    %14 = vector.load %arg8[%c0_14, %c0_15] : memref<1x128xf32, #tpu.memory_space<vmem>>, vector<1x128xf32>
    %15 = vector.broadcast %14 : vector<1x128xf32> to vector<256x128xf32>
    %16 = arith.addf %13, %15 : vector<256x128xf32>
    %17 = arith.truncf %6 : vector<256x128xf32> to vector<256x128xbf16>
    %c0_16 = arith.constant 0 : index
    %c0_17 = arith.constant 0 : index
    %c0_18 = arith.constant 0 : index
    %18 = vector.load %arg9[%c0_16, %c0_17, %c0_18] : memref<1x256x128xbf16, #tpu.memory_space<vmem>>, vector<1x256x128xbf16>
    %19 = vector.shape_cast %18 : vector<1x256x128xbf16> to vector<256x128xbf16>
    %20 = vector.shape_cast %17 : vector<256x128xbf16> to vector<1x256x128xbf16>
    tpu.vector_store %arg9[%c0_16, %c0_17, %c0_18], %20 {strides = array<i32>} : memref<1x256x128xbf16, #tpu.memory_space<vmem>>, vector<1x256x128xbf16>,
    %21 = arith.truncf %11 : vector<256x128xf32> to vector<256x128xbf16>
    %c0_19 = arith.constant 0 : index
    %c0_20 = arith.constant 0 : index
    %c0_21 = arith.constant 0 : index
    %22 = vector.load %arg10[%c0_19, %c0_20, %c0_21] : memref<1x256x128xbf16, #tpu.memory_space<vmem>>, vector<1x256x128xbf16>
    %23 = vector.shape_cast %22 : vector<1x256x128xbf16> to vector<256x128xbf16>
    %24 = vector.shape_cast %21 : vector<256x128xbf16> to vector<1x256x128xbf16>
    tpu.vector_store %arg10[%c0_19, %c0_20, %c0_21], %24 {strides = array<i32>} : memref<1x256x128xbf16, #tpu.memory_space<vmem>>, vector<1x256x128xbf16>,
    %25 = arith.truncf %16 : vector<256x128xf32> to vector<256x128xbf16>
    %c0_22 = arith.constant 0 : index
    %c0_23 = arith.constant 0 : index
    %c0_24 = arith.constant 0 : index
    %26 = vector.load %arg11[%c0_22, %c0_23, %c0_24] : memref<1x256x128xbf16, #tpu.memory_space<vmem>>, vector<1x256x128xbf16>
    %27 = vector.shape_cast %26 : vector<1x256x128xbf16> to vector<256x128xbf16>
    %28 = vector.shape_cast %25 : vector<256x128xbf16> to vector<1x256x128xbf16>
    tpu.vector_store %arg11[%c0_22, %c0_23, %c0_24], %28 {strides = array<i32>} : memref<1x256x128xbf16, #tpu.memory_space<vmem>>, vector<1x256x128xbf16>,
    return
  }
  func.func @transform_0(%arg0: i32, %arg1: i32) -> (i32, i32, i32) {
    %c0_i32 = arith.constant 0 : i32
    %c0_i32_0 = arith.constant 0 : i32
    return %arg0, %arg1, %c0_i32 : i32, i32, i32
  }
  func.func @transform_1(%arg0: i32, %arg1: i32) -> (i32, i32) {
    %c0_i32 = arith.constant 0 : i32
    %c0_i32_0 = arith.constant 0 : i32
    %c0_i32_1 = arith.constant 0 : i32
    return %c0_i32, %c0_i32_0 : i32, i32
  }
  func.func @transform_2(%arg0: i32, %arg1: i32) -> (i32, i32) {
    %c0_i32 = arith.constant 0 : i32
    %c0_i32_0 = arith.constant 0 : i32
    %c0_i32_1 = arith.constant 0 : i32
    return %c0_i32, %c0_i32_0 : i32, i32
  }
  func.func @transform_3(%arg0: i32, %arg1: i32) -> (i32, i32) {
    %c0_i32 = arith.constant 0 : i32
    %c0_i32_0 = arith.constant 0 : i32
    %c0_i32_1 = arith.constant 0 : i32
    return %c0_i32, %c0_i32_0 : i32, i32
  }
  func.func @transform_4(%arg0: i32, %arg1: i32) -> (i32, i32) {
    %c0_i32 = arith.constant 0 : i32
    %c0_i32_0 = arith.constant 0 : i32
    %c0_i32_1 = arith.constant 0 : i32
    return %c0_i32, %c0_i32_0 : i32, i32
  }
  func.func @transform_5(%arg0: i32, %arg1: i32) -> (i32, i32) {
    %c0_i32 = arith.constant 0 : i32
    %c0_i32_0 = arith.constant 0 : i32
    %c0_i32_1 = arith.constant 0 : i32
    return %c0_i32, %c0_i32_0 : i32, i32
  }
  func.func @transform_6(%arg0: i32, %arg1: i32) -> (i32, i32) {
    %c0_i32 = arith.constant 0 : i32
    %c0_i32_0 = arith.constant 0 : i32
    %c0_i32_1 = arith.constant 0 : i32
    return %c0_i32, %c0_i32_0 : i32, i32
  }
  func.func @transform_7(%arg0: i32, %arg1: i32) -> (i32, i32, i32) {
    %c0_i32 = arith.constant 0 : i32
    %c0_i32_0 = arith.constant 0 : i32
    return %arg0, %arg1, %c0_i32 : i32, i32, i32
  }
  func.func @transform_8(%arg0: i32, %arg1: i32) -> (i32, i32, i32) {
    %c0_i32 = arith.constant 0 : i32
    %c0_i32_0 = arith.constant 0 : i32
    return %arg0, %arg1, %c0_i32 : i32, i32, i32
  }
  func.func @transform_9(%arg0: i32, %arg1: i32) -> (i32, i32, i32) {
    %c0_i32 = arith.constant 0 : i32
    %c0_i32_0 = arith.constant 0 : i32
    return %arg0, %arg1, %c0_i32 : i32, i32, i32
  }
}

</mosaic_0001>

<llo_original>
// kernel: tpu_custom_call.1
$region0: #{tpu_custom_call.1}
  #allocation0 [shape = 'u32[]', space=smem, size = 0x4, offset = 0x4, fixed_abs, tag = 'smem constant byte address 0x4 - core index']
  #allocation1 [shape = 'u32[144,128]{1,0:T(1,128)}', space=vmem, size = 0x12000, scoped, tag = 'internal scratch']
  %s0 = inlined_call_operand.hbm [shape: f32[2,512,128], index: 0, kind: input, shape index: {}]
  %s1 = inlined_call_operand.hbm [shape: f32[128,128], index: 1, kind: input, shape index: {}]
  %s2 = inlined_call_operand.vmem [shape: f32[1,128], index: 2, kind: input, shape index: {}]
  %s3 = inlined_call_operand.hbm [shape: f32[128,128], index: 3, kind: input, shape index: {}]
  %s4 = inlined_call_operand.vmem [shape: f32[1,128], index: 4, kind: input, shape index: {}]
  %s5 = inlined_call_operand.hbm [shape: f32[128,128], index: 5, kind: input, shape index: {}]
  %s6 = inlined_call_operand.vmem [shape: f32[1,128], index: 6, kind: input, shape index: {}]
  %s7 = inlined_call_operand.hbm [shape: bf16[2,512,128], index: 7, kind: output, shape index: {0}]
  %s8 = inlined_call_operand.hbm [shape: bf16[2,512,128], index: 8, kind: output, shape index: {1}]
  %s9 = inlined_call_operand.hbm [shape: bf16[2,512,128], index: 9, kind: output, shape index: {2}]
  %10 = xla_tuple %s7, %s8, %s9
  %s11 = sld [smem:[#allocation0]]
  $region93: #{tpu_custom_call.1} parent=0
    _
  %s13 = ssub.s32 1, %s11
  %s14 = scalar_select 0, %s13, %s11
  $region1: #{tpu_custom_call.1} parent=0
    #allocation2 [shape = 'u8[262144]{0}', space=vmem, size = 0x40000, scoped, tag = 'input window, operand 0']
    #allocation3 [shape = 's32[2]{0}', space=sflag, size = 0x8, scoped, tag = 'scoped memory for tpu_custom_call.1']
    #allocation4 [shape = 's32[2]{0}', space=sflag, size = 0x8, scoped, tag = 'scoped memory for tpu_custom_call.1']
    #allocation5 [shape = 'u8[65536]{0}', space=vmem, size = 0x10000, scoped, tag = 'input window, operand 1, single buffered']
    #allocation6 [shape = 's32[1]{0}', space=sflag, size = 0x4, scoped, tag = 'scoped memory for tpu_custom_call.1']
    #allocation7 [shape = 'u8[65536]{0}', space=vmem, size = 0x10000, scoped, tag = 'input window, operand 3, single buffered']
    #allocation8 [shape = 'u8[65536]{0}', space=vmem, size = 0x10000, scoped, tag = 'input window, operand 5, single buffered']
    #allocation9 [shape = 's32[1]{0}', space=sflag, size = 0x4, scoped, tag = 'scoped memory for tpu_custom_call.1']
    #allocation10 [shape = 'u8[131072]{0}', space=vmem, size = 0x20000, scoped, tag = 'output window, operand 0']
    #allocation11 [shape = 'u8[131072]{0}', space=vmem, size = 0x20000, scoped, tag = 'output window, operand 1']
    #allocation12 [shape = 's32[2]{0}', space=sflag, size = 0x8, scoped, tag = 'scoped memory for tpu_custom_call.1']
    #allocation13 [shape = 'u8[131072]{0}', space=vmem, size = 0x20000, scoped, tag = 'output window, operand 2']
    %15 = vsyncpa [#allocation3], 0
    %s16 = scalar_lea.sflag [#allocation3], 1
    %17 = vsyncpa %s16, 0
    %18 = vsyncpa [#allocation6], 0
    %19 = vsyncpa [#allocation9], 0
    %20 = vsyncpa [#allocation4], 0
    %s21 = scalar_lea.sflag [#allocation4], 1
    %22 = vsyncpa %s21, 0
    %23 = vsyncpa [#allocation12], 0
    %s24 = scalar_lea.sflag [#allocation12], 1
    %25 = vsyncpa %s24, 0
    loop: start=0, step=1, limit=6
    $region2: #{tpu_custom_call.1} parent=1 // loop_pre_header
      _
    $region3: #{tpu_custom_call.1} parent=1 // loop_header
      %s27 = sphi 0, %s31
      %p28 = scmp.ge.s32.totalorder %s27, 6
      %s34 = sphi 0, %s46
      %s35 = sphi 0, %s42
      %s36 = sphi 0, %s34
      %s37 = sphi 0, %s35
      %s38 = sphi 0, %s36
      %s39 = sphi 0, %s37
      %s51 = sphi 0, %s53
      %s54 = sphi 0, %s51
      %s55 = sphi 0, %s54
      %s71 = sphi 0, %s55
      %s75 = sphi 0, %s75
      %s77 = sphi 0, %s75
      %s78 = sphi 0, %s77
      %s92 = sphi 0, %s78
      %s96 = sphi 0, %s96
      %s98 = sphi 0, %s96
      %s99 = sphi 0, %s98
      %s113 = sphi 0, %s99
      %s117 = sphi 0, %s117
      %s119 = sphi 0, %s117
      %s120 = sphi 0, %s119
      %s134 = sphi 0, %s120
      %s138 = sphi 0, %s138
      %s140 = sphi 0, %s138
      %s141 = sphi 0, %s140
      %s155 = sphi 0, %s141
      %s159 = sphi 0, %s159
      %s161 = sphi 0, %s159
      %s162 = sphi 0, %s161
      %s176 = sphi 0, %s162
      %s180 = sphi 0, %s180
      %s182 = sphi 0, %s180
      %s183 = sphi 0, %s182
      %s197 = sphi 0, %s183
      %s205 = sphi 0, %s207
      %s208 = sphi 0, %s205
      %s209 = sphi 0, %s208
      %s225 = sphi 0, %s209
      %s233 = sphi 0, %s235
      %s236 = sphi 0, %s233
      %s237 = sphi 0, %s236
      %s253 = sphi 0, %s237
      %s261 = sphi 0, %s263
      %s264 = sphi 0, %s261
      %s265 = sphi 0, %s264
      %s281 = sphi 0, %s265
    $region4: #{tpu_custom_call.1} parent=1 // loop_header_branch
      %30 = sbr.rel (%p28) target = $region8
    $region5: #{tpu_custom_call.1} parent=1 // loop_body
      %s32 = ssub.s32 %s27, 1
      %s33 = ssub.s32 %s27, 2
      %s40 = sadd.s32 1, %s35
      %p41 = scmp.ge.s32.totalorder %s40, 2
      %s42 = scalar_select %p41, 0, %s40
      %s43 = sadd.s32 1, %s34
      %s44 = scalar_select %p41, %s43, %s34
      %p45 = scmp.ge.s32.totalorder %s44, 2
      %s46 = scalar_select %p45, 0, %s44
      %s47 = ssub.s32 %s34, %s46
      %s48 = ssub.s32 %s35, %s42
      %s49 = sor.u32 %s47, %s48
      %p50 = scmp.eq.s32.totalorder %s49, 0
      %s52 = sadd.s32 %s51, 1
      %s53 = scalar_select %p50, %s51, %s52
      %p56 = pneg %p50
      %p57 = scmp.eq.s32.totalorder %s27, 3
      %p58 = por %p56, %p57
      %p59 = scmp.ne.s32.totalorder %s51, %s54
      %p60 = scmp.eq.s32.totalorder %s27, 0
      %p61 = por %p59, %p60
      %p62 = scmp.ne.s32.totalorder %s51, %s54
      %p63 = scmp.eq.s32.totalorder %s32, 3
      %p64 = por %p62, %p63
      %p65 = scmp.ne.s32.totalorder %s54, %s55
      %p66 = scmp.eq.s32.totalorder %s32, 0
      %p67 = por %p65, %p66
      %p68 = scmp.ne.s32.totalorder %s54, %s55
      %p69 = scmp.eq.s32.totalorder %s33, 3
      %p70 = por %p68, %p69
      %p72 = scmp.ne.s32.totalorder %s55, %s71
      %p73 = scmp.eq.s32.totalorder %s33, 0
      %p74 = por %p72, %p73
      %s76 = sadd.s32 %s75, 1
      %p79 = scmp.eq.s32.totalorder %s27, 3
      %p80 = scmp.ne.s32.totalorder %s75, %s77
      %p81 = scmp.eq.s32.totalorder %s27, 0
      %p82 = por %p80, %p81
      %p83 = scmp.ne.s32.totalorder %s75, %s77
      %p84 = scmp.eq.s32.totalorder %s32, 3
      %p85 = por %p83, %p84
      %p86 = scmp.ne.s32.totalorder %s77, %s78
      %p87 = scmp.eq.s32.totalorder %s32, 0
      %p88 = por %p86, %p87
      %p89 = scmp.ne.s32.totalorder %s77, %s78
      %p90 = scmp.eq.s32.totalorder %s33, 3
      %p91 = por %p89, %p90
      %p93 = scmp.ne.s32.totalorder %s78, %s92
      %p94 = scmp.eq.s32.totalorder %s33, 0
      %p95 = por %p93, %p94
      %s97 = sadd.s32 %s96, 1
      %p100 = scmp.eq.s32.totalorder %s27, 3
      %p101 = scmp.ne.s32.totalorder %s96, %s98
      %p102 = scmp.eq.s32.totalorder %s27, 0
      %p103 = por %p101, %p102
      %p104 = scmp.ne.s32.totalorder %s96, %s98
      %p105 = scmp.eq.s32.totalorder %s32, 3
      %p106 = por %p104, %p105
      %p107 = scmp.ne.s32.totalorder %s98, %s99
      %p108 = scmp.eq.s32.totalorder %s32, 0
      %p109 = por %p107, %p108
      %p110 = scmp.ne.s32.totalorder %s98, %s99
      %p111 = scmp.eq.s32.totalorder %s33, 3
      %p112 = por %p110, %p111
      %p114 = scmp.ne.s32.totalorder %s99, %s113
      %p115 = scmp.eq.s32.totalorder %s33, 0
      %p116 = por %p114, %p115
      %s118 = sadd.s32 %s117, 1
      %p121 = scmp.eq.s32.totalorder %s27, 3
      %p122 = scmp.ne.s32.totalorder %s117, %s119
      %p123 = scmp.eq.s32.totalorder %s27, 0
      %p124 = por %p122, %p123
      %p125 = scmp.ne.s32.totalorder %s117, %s119
      %p126 = scmp.eq.s32.totalorder %s32, 3
      %p127 = por %p125, %p126
      %p128 = scmp.ne.s32.totalorder %s119, %s120
      %p129 = scmp.eq.s32.totalorder %s32, 0
      %p130 = por %p128, %p129
      %p131 = scmp.ne.s32.totalorder %s119, %s120
      %p132 = scmp.eq.s32.totalorder %s33, 3
      %p133 = por %p131, %p132
      %p135 = scmp.ne.s32.totalorder %s120, %s134
      %p136 = scmp.eq.s32.totalorder %s33, 0
      %p137 = por %p135, %p136
      %s139 = sadd.s32 %s138, 1
      %p142 = scmp.eq.s32.totalorder %s27, 3
      %p143 = scmp.ne.s32.totalorder %s138, %s140
      %p144 = scmp.eq.s32.totalorder %s27, 0
      %p145 = por %p143, %p144
      %p146 = scmp.ne.s32.totalorder %s138, %s140
      %p147 = scmp.eq.s32.totalorder %s32, 3
      %p148 = por %p146, %p147
      %p149 = scmp.ne.s32.totalorder %s140, %s141
      %p150 = scmp.eq.s32.totalorder %s32, 0
      %p151 = por %p149, %p150
      %p152 = scmp.ne.s32.totalorder %s140, %s141
      %p153 = scmp.eq.s32.totalorder %s33, 3
      %p154 = por %p152, %p153
      %p156 = scmp.ne.s32.totalorder %s141, %s155
      %p157 = scmp.eq.s32.totalorder %s33, 0
      %p158 = por %p156, %p157
      %s160 = sadd.s32 %s159, 1
      %p163 = scmp.eq.s32.totalorder %s27, 3
      %p164 = scmp.ne.s32.totalorder %s159, %s161
      %p165 = scmp.eq.s32.totalorder %s27, 0
      %p166 = por %p164, %p165
      %p167 = scmp.ne.s32.totalorder %s159, %s161
      %p168 = scmp.eq.s32.totalorder %s32, 3
      %p169 = por %p167, %p168
      %p170 = scmp.ne.s32.totalorder %s161, %s162
      %p171 = scmp.eq.s32.totalorder %s32, 0
      %p172 = por %p170, %p171
      %p173 = scmp.ne.s32.totalorder %s161, %s162
      %p174 = scmp.eq.s32.totalorder %s33, 3
      %p175 = por %p173, %p174
      %p177 = scmp.ne.s32.totalorder %s162, %s176
      %p178 = scmp.eq.s32.totalorder %s33, 0
      %p179 = por %p177, %p178
      %s181 = sadd.s32 %s180, 1
      %p184 = scmp.eq.s32.totalorder %s27, 3
      %p185 = scmp.ne.s32.totalorder %s180, %s182
      %p186 = scmp.eq.s32.totalorder %s27, 0
      %p187 = por %p185, %p186
      %p188 = scmp.ne.s32.totalorder %s180, %s182
      %p189 = scmp.eq.s32.totalorder %s32, 3
      %p190 = por %p188, %p189
      %p191 = scmp.ne.s32.totalorder %s182, %s183
      %p192 = scmp.eq.s32.totalorder %s32, 0
      %p193 = por %p191, %p192
      %p194 = scmp.ne.s32.totalorder %s182, %s183
      %p195 = scmp.eq.s32.totalorder %s33, 3
      %p196 = por %p194, %p195
      %p198 = scmp.ne.s32.totalorder %s183, %s197
      %p199 = scmp.eq.s32.totalorder %s33, 0
      %p200 = por %p198, %p199
      %s201 = ssub.s32 %s34, %s46
      %s202 = ssub.s32 %s35, %s42
      %s203 = sor.u32 %s201, %s202
      %p204 = scmp.eq.s32.totalorder %s203, 0
      %s206 = sadd.s32 %s205, 1
      %s207 = scalar_select %p204, %s205, %s206
      %p210 = pneg %p204
      %p211 = scmp.eq.s32.totalorder %s27, 3
      %p212 = por %p210, %p211
      %p213 = scmp.ne.s32.totalorder %s205, %s208
      %p214 = scmp.eq.s32.totalorder %s27, 0
      %p215 = por %p213, %p214
      %p216 = scmp.ne.s32.totalorder %s205, %s208
      %p217 = scmp.eq.s32.totalorder %s32, 3
      %p218 = por %p216, %p217
      %p219 = scmp.ne.s32.totalorder %s208, %s209
      %p220 = scmp.eq.s32.totalorder %s32, 0
      %p221 = por %p219, %p220
      %p222 = scmp.ne.s32.totalorder %s208, %s209
      %p223 = scmp.eq.s32.totalorder %s33, 3
      %p224 = por %p222, %p223
      %p226 = scmp.ne.s32.totalorder %s209, %s225
      %p227 = scmp.eq.s32.totalorder %s33, 0
      %p228 = por %p226, %p227
      %s229 = ssub.s32 %s34, %s46
      %s230 = ssub.s32 %s35, %s42
      %s231 = sor.u32 %s229, %s230
      %p232 = scmp.eq.s32.totalorder %s231, 0
      %s234 = sadd.s32 %s233, 1
      %s235 = scalar_select %p232, %s233, %s234
      %p238 = pneg %p232
      %p239 = scmp.eq.s32.totalorder %s27, 3
      %p240 = por %p238, %p239
      %p241 = scmp.ne.s32.totalorder %s233, %s236
      %p242 = scmp.eq.s32.totalorder %s27, 0
      %p243 = por %p241, %p242
      %p244 = scmp.ne.s32.totalorder %s233, %s236
      %p245 = scmp.eq.s32.totalorder %s32, 3
      %p246 = por %p244, %p245
      %p247 = scmp.ne.s32.totalorder %s236, %s237
      %p248 = scmp.eq.s32.totalorder %s32, 0
      %p249 = por %p247, %p248
      %p250 = scmp.ne.s32.totalorder %s236, %s237
      %p251 = scmp.eq.s32.totalorder %s33, 3
      %p252 = por %p250, %p251
      %p254 = scmp.ne.s32.totalorder %s237, %s253
      %p255 = scmp.eq.s32.totalorder %s33, 0
      %p256 = por %p254, %p255
      %s257 = ssub.s32 %s34, %s46
      %s258 = ssub.s32 %s35, %s42
      %s259 = sor.u32 %s257, %s258
      %p260 = scmp.eq.s32.totalorder %s259, 0
      %s262 = sadd.s32 %s261, 1
      %s263 = scalar_select %p260, %s261, %s262
      %p266 = pneg %p260
      %p267 = scmp.eq.s32.totalorder %s27, 3
      %p268 = por %p266, %p267
      %p269 = scmp.ne.s32.totalorder %s261, %s264
      %p270 = scmp.eq.s32.totalorder %s27, 0
      %p271 = por %p269, %p270
      %p272 = scmp.ne.s32.totalorder %s261, %s264
      %p273 = scmp.eq.s32.totalorder %s32, 3
      %p274 = por %p272, %p273
      %p275 = scmp.ne.s32.totalorder %s264, %s265
      %p276 = scmp.eq.s32.totalorder %s32, 0
      %p277 = por %p275, %p276
      %p278 = scmp.ne.s32.totalorder %s264, %s265
      %p279 = scmp.eq.s32.totalorder %s33, 3
      %p280 = por %p278, %p279
      %p282 = scmp.ne.s32.totalorder %s265, %s281
      %p283 = scmp.eq.s32.totalorder %s33, 0
      %p284 = por %p282, %p283
      %p285 = scmp.le.s32.totalorder 1, %s27
      %p286 = scmp.lt.s32.totalorder %s27, 5
      %p287 = pnand %p285, %p286
      %p288 = pneg %p287
      // Predicated region
      $region9: #{tpu_custom_call.1} parent=5 // pred_check
        _
      $region10: #{tpu_custom_call.1} parent=5 // pred_check_branch
        %290 = sbr.rel (%p287) target = $region12
      $region11: #{tpu_custom_call.1} parent=5 // pred_region
        %s291 = ssub.s32 %s27, 1
        // Predicated region
        $region13: #{tpu_custom_call.1} parent=11 // pred_check
          %p292 = pneg %p88
        $region14: #{tpu_custom_call.1} parent=11 // pred_check_branch
          %294 = sbr.rel (%p292) target = $region16
        $region15: #{tpu_custom_call.1} parent=11 // pred_region
          %s296 = ssub.s32 2048, 2048
          %297 = vsyncadd [#allocation6], %s296
          %s298 = sshll.u32 [#allocation5], 4
          %s299 = int_to_ptr.vmem [resolvable:$true] %s298
          %304 = dma.hbm_to_vmem [thread:$0]  %s1, 2048, %s299, [#allocation6], 128, 128, 8
        $region16: #{tpu_custom_call.1} parent=11 // pred_fallthru
          _
        // Predicated region
        $region17: #{tpu_custom_call.1} parent=11 // pred_check
          %p305 = pneg %p109
        $region18: #{tpu_custom_call.1} parent=11 // pred_check_branch
          %307 = sbr.rel (%p305) target = $region20
        $region19: #{tpu_custom_call.1} parent=11 // pred_region
          _
        $region20: #{tpu_custom_call.1} parent=11 // pred_fallthru
          _
        // Predicated region
        $region21: #{tpu_custom_call.1} parent=11 // pred_check
          %p308 = pneg %p130
        $region22: #{tpu_custom_call.1} parent=11 // pred_check_branch
          %310 = sbr.rel (%p308) target = $region24
        $region23: #{tpu_custom_call.1} parent=11 // pred_region
          %s312 = ssub.s32 2048, 2048
          %313 = vsyncadd [#allocation6], %s312
          %s314 = sshll.u32 [#allocation7], 4
          %s315 = int_to_ptr.vmem [resolvable:$true] %s314
          %320 = dma.hbm_to_vmem [thread:$0]  %s3, 2048, %s315, [#allocation6], 128, 128, 8
        $region24: #{tpu_custom_call.1} parent=11 // pred_fallthru
          _
        // Predicated region
        $region25: #{tpu_custom_call.1} parent=11 // pred_check
          %p321 = pneg %p151
        $region26: #{tpu_custom_call.1} parent=11 // pred_check_branch
          %323 = sbr.rel (%p321) target = $region28
        $region27: #{tpu_custom_call.1} parent=11 // pred_region
          _
        $region28: #{tpu_custom_call.1} parent=11 // pred_fallthru
          _
        // Predicated region
        $region29: #{tpu_custom_call.1} parent=11 // pred_check
          %p324 = pneg %p172
        $region30: #{tpu_custom_call.1} parent=11 // pred_check_branch
          %326 = sbr.rel (%p324) target = $region32
        $region31: #{tpu_custom_call.1} parent=11 // pred_region
          %s328 = ssub.s32 2048, 2048
          %329 = vsyncadd [#allocation9], %s328
          %s330 = sshll.u32 [#allocation8], 4
          %s331 = int_to_ptr.vmem [resolvable:$true] %s330
          %336 = dma.hbm_to_vmem [thread:$0]  %s5, 2048, %s331, [#allocation9], 128, 128, 8
        $region32: #{tpu_custom_call.1} parent=11 // pred_fallthru
          _
        // Predicated region
        $region33: #{tpu_custom_call.1} parent=11 // pred_check
          %p337 = pneg %p193
        $region34: #{tpu_custom_call.1} parent=11 // pred_check_branch
          %339 = sbr.rel (%p337) target = $region36
        $region35: #{tpu_custom_call.1} parent=11 // pred_region
          _
        $region36: #{tpu_custom_call.1} parent=11 // pred_fallthru
          _
      $region12: #{tpu_custom_call.1} parent=5 // pred_fallthru
        _
      %p340 = scmp.lt.s32.totalorder %s27, 4
      // Predicated region
      $region37: #{tpu_custom_call.1} parent=5 // pred_check
        %p341 = pneg %p340
      $region38: #{tpu_custom_call.1} parent=5 // pred_check_branch
        %343 = sbr.rel (%p341) target = $region40
      $region39: #{tpu_custom_call.1} parent=5 // pred_region
        // Predicated region
        $region41: #{tpu_custom_call.1} parent=39 // pred_check
          %p344 = pneg %p61
        $region42: #{tpu_custom_call.1} parent=39 // pred_check_branch
          %346 = sbr.rel (%p344) target = $region44
        $region43: #{tpu_custom_call.1} parent=39 // pred_region
          %s347 = sand.u32 %s51, 1
          %s348 = scalar_lea.sflag [#allocation3], %s347
          %s349 = sand.u32 %s51, 1
          %s350 = smul.addr %s349, 256
          %s351 = scalar_lea.vmem [#allocation2], %s350
          %s352 = smul.u32 32, %s35
          %s354 = ssub.s32 4096, 4096
          %355 = vsyncadd %s348, %s354
          %s356 = smul.addr %s34, 64
          %s357 = sadd.s32 %s352, %s356
          %s358 = smul.addr %s357, 128
          %s359 = scalar_lea.hbm %s0, %s358
          %s360 = sshll.u32 %s351, 4
          %s361 = int_to_ptr.vmem [resolvable:$true] %s360
          %366 = dma.hbm_to_vmem [thread:$0]  %s359, 4096, %s361, %s348, 128, 128, 8
        $region44: #{tpu_custom_call.1} parent=39 // pred_fallthru
          _
      $region40: #{tpu_custom_call.1} parent=5 // pred_fallthru
        _
      %p367 = scmp.le.s32.totalorder 1, %s27
      %p368 = scmp.lt.s32.totalorder %s27, 5
      %p369 = pnand %p367, %p368
      %p370 = pneg %p369
      // Predicated region
      $region45: #{tpu_custom_call.1} parent=5 // pred_check
        _
      $region46: #{tpu_custom_call.1} parent=5 // pred_check_branch
        %372 = sbr.rel (%p369) target = $region48
      $region47: #{tpu_custom_call.1} parent=5 // pred_region
        %s373 = ssub.s32 %s27, 1
        %s374 = sand.u32 %s54, 1
        %s375 = scalar_lea.sflag [#allocation3], %s374
        %s376 = sand.u32 %s54, 1
        %s377 = smul.addr %s376, 256
        %s378 = scalar_lea.vmem [#allocation2], %s377
        // Predicated region
        $region49: #{tpu_custom_call.1} parent=47 // pred_check
          %p379 = pneg %p67
        $region50: #{tpu_custom_call.1} parent=47 // pred_check_branch
          %381 = sbr.rel (%p379) target = $region52
        $region51: #{tpu_custom_call.1} parent=47 // pred_region
          %382 = dma.done %s375, 4096
        $region52: #{tpu_custom_call.1} parent=47 // pred_fallthru
          _
        // Predicated region
        $region53: #{tpu_custom_call.1} parent=47 // pred_check
          %p383 = pneg %p88
        $region54: #{tpu_custom_call.1} parent=47 // pred_check_branch
          %385 = sbr.rel (%p383) target = $region56
        $region55: #{tpu_custom_call.1} parent=47 // pred_region
          %386 = dma.done [#allocation6], 2048
        $region56: #{tpu_custom_call.1} parent=47 // pred_fallthru
          _
        // Predicated region
        $region57: #{tpu_custom_call.1} parent=47 // pred_check
          %p387 = pneg %p130
        $region58: #{tpu_custom_call.1} parent=47 // pred_check_branch
          %389 = sbr.rel (%p387) target = $region60
        $region59: #{tpu_custom_call.1} parent=47 // pred_region
          %390 = dma.done [#allocation6], 2048
        $region60: #{tpu_custom_call.1} parent=47 // pred_fallthru
          _
        // Predicated region
        $region61: #{tpu_custom_call.1} parent=47 // pred_check
          %p391 = pneg %p172
        $region62: #{tpu_custom_call.1} parent=47 // pred_check_branch
          %393 = sbr.rel (%p391) target = $region64
        $region63: #{tpu_custom_call.1} parent=47 // pred_region
          %394 = dma.done [#allocation9], 2048
        $region64: #{tpu_custom_call.1} parent=47 // pred_fallthru
          _
        %s395 = sand.u32 %s54, 1
        %s396 = scalar_lea.sflag [#allocation3], %s395
        %s397 = sand.u32 %s54, 1
        %s398 = smul.addr %s397, 256
        %s399 = scalar_lea.vmem [#allocation2], %s398
        %p400 = pneg %p67
        %p401 = pneg %p64
        %p402 = pneg %p88
        %p403 = pneg %p85
        %p404 = pneg %p109
        %p405 = pneg %p106
        %p406 = pneg %p130
        %p407 = pneg %p127
        %p408 = pneg %p151
        %p409 = pneg %p148
        %p410 = pneg %p172
        %p411 = pneg %p169
        %p412 = pneg %p193
        %p413 = pneg %p190
        %p414 = pneg %p221
        %p415 = pneg %p218
        %s416 = sand.u32 %s208, 1
        %s417 = scalar_lea.sflag [#allocation4], %s416
        %s418 = sand.u32 %s208, 1
        %s419 = smul.addr %s418, 128
        %s420 = scalar_lea.vmem [#allocation10], %s419
        %p421 = pneg %p249
        %p422 = pneg %p246
        %s423 = sand.u32 %s32, 1
        %s424 = scalar_lea.sflag [#allocation12], %s423
        %s425 = sand.u32 %s236, 1
        %s426 = smul.addr %s425, 128
        %s427 = scalar_lea.vmem [#allocation11], %s426
        %p428 = pneg %p277
        %p429 = pneg %p274
        %s430 = sand.u32 %s32, 1
        %s431 = scalar_lea.sflag [#allocation12], %s430
        %s432 = sand.u32 %s264, 1
        %s433 = smul.addr %s432, 128
        %s434 = scalar_lea.vmem [#allocation13], %s433
        %s435 = smul.u32 32, %s37
        %s436 = smul.u32 32, %s37
        %s437 = smul.u32 32, %s37
        %s438 = smul.u32 32, %s37
        %v439 = vld [vmem:[%s378] sm:$0xff]
        %v440 = vld [vmem:[%s378 + $0x8] sm:$0xff]
        %v441 = vld [vmem:[%s378 + $0x10] sm:$0xff]
        %v442 = vld [vmem:[%s378 + $0x18] sm:$0xff]
        %v443 = vld [vmem:[%s378 + $0x20] sm:$0xff]
        %v444 = vld [vmem:[%s378 + $0x28] sm:$0xff]
        %v445 = vld [vmem:[%s378 + $0x30] sm:$0xff]
        %v446 = vld [vmem:[%s378 + $0x38] sm:$0xff]
        %v447 = vld [vmem:[%s378 + $0x40] sm:$0xff]
        %v448 = vld [vmem:[%s378 + $0x48] sm:$0xff]
        %v449 = vld [vmem:[%s378 + $0x50] sm:$0xff]
        %v450 = vld [vmem:[%s378 + $0x58] sm:$0xff]
        %v451 = vld [vmem:[%s378 + $0x60] sm:$0xff]
        %v452 = vld [vmem:[%s378 + $0x68] sm:$0xff]
        %v453 = vld [vmem:[%s378 + $0x70] sm:$0xff]
        %v454 = vld [vmem:[%s378 + $0x78] sm:$0xff]
        %v455 = vld [vmem:[%s378 + $0x80] sm:$0xff]
        %v456 = vld [vmem:[%s378 + $0x88] sm:$0xff]
        %v457 = vld [vmem:[%s378 + $0x90] sm:$0xff]
        %v458 = vld [vmem:[%s378 + $0x98] sm:$0xff]
        %v459 = vld [vmem:[%s378 + $0xa0] sm:$0xff]
        %v460 = vld [vmem:[%s378 + $0xa8] sm:$0xff]
        %v461 = vld [vmem:[%s378 + $0xb0] sm:$0xff]
        %v462 = vld [vmem:[%s378 + $0xb8] sm:$0xff]
        %v463 = vld [vmem:[%s378 + $0xc0] sm:$0xff]
        %v464 = vld [vmem:[%s378 + $0xc8] sm:$0xff]
        %v465 = vld [vmem:[%s378 + $0xd0] sm:$0xff]
        %v466 = vld [vmem:[%s378 + $0xd8] sm:$0xff]
        %v467 = vld [vmem:[%s378 + $0xe0] sm:$0xff]
        %v468 = vld [vmem:[%s378 + $0xe8] sm:$0xff]
        %v469 = vld [vmem:[%s378 + $0xf0] sm:$0xff]
        %v470 = vld [vmem:[%s378 + $0xf8] sm:$0xff]
        %v471 = vld [vmem:[#allocation5] sm:$0xff]
        %v472 = vld [vmem:[#allocation5 + $0x8] sm:$0xff]
        %v473 = vld [vmem:[#allocation5 + $0x10] sm:$0xff]
        %v474 = vld [vmem:[#allocation5 + $0x18] sm:$0xff]
        %v475 = vld [vmem:[#allocation5 + $0x20] sm:$0xff]
        %v476 = vld [vmem:[#allocation5 + $0x28] sm:$0xff]
        %v477 = vld [vmem:[#allocation5 + $0x30] sm:$0xff]
        %v478 = vld [vmem:[#allocation5 + $0x38] sm:$0xff]
        %v479 = vld [vmem:[#allocation5 + $0x40] sm:$0xff]
        %v480 = vld [vmem:[#allocation5 + $0x48] sm:$0xff]
        %v481 = vld [vmem:[#allocation5 + $0x50] sm:$0xff]
        %v482 = vld [vmem:[#allocation5 + $0x58] sm:$0xff]
        %v483 = vld [vmem:[#allocation5 + $0x60] sm:$0xff]
        %v484 = vld [vmem:[#allocation5 + $0x68] sm:$0xff]
        %v485 = vld [vmem:[#allocation5 + $0x70] sm:$0xff]
        %v486 = vld [vmem:[#allocation5 + $0x78] sm:$0xff]
        %v487 = vld [vmem:[%s2] sm:$0x1]
        %v489 = vlaneseq
        %v490 = vshrl.u32 %v489, 7
        %v491 = vsub.s32 0, %v490
        %v492 = vrot.slane %v487, %v491
        %494 = vmatprep.subr.mxu0 0.0
        %495 = vmatpush1.msra.mxu0 %v471
        %496 = vmatprep.subr.mxu0 0.0
        %497 = vmatpush1.msra.mxu0 %v472
        %498 = vmatprep.subr.mxu0 0.0
        %499 = vmatpush1.msra.mxu0 %v473
        %500 = vmatprep.subr.mxu0 0.0
        %501 = vmatpush1.msra.mxu0 %v474
        %502 = vmatprep.subr.mxu0 0.0
        %503 = vmatpush1.msra.mxu0 %v475
        %504 = vmatprep.subr.mxu0 0.0
        %505 = vmatpush1.msra.mxu0 %v476
        %506 = vmatprep.subr.mxu0 0.0
        %507 = vmatpush1.msra.mxu0 %v477
        %508 = vmatprep.subr.mxu0 0.0
        %509 = vmatpush1.msra.mxu0 %v478
        %510 = vmatprep.subr.mxu0 0.0
        %511 = vmatpush1.msra.mxu0 %v479
        %512 = vmatprep.subr.mxu0 0.0
        %513 = vmatpush1.msra.mxu0 %v480
        %514 = vmatprep.subr.mxu0 0.0
        %515 = vmatpush1.msra.mxu0 %v481
        %516 = vmatprep.subr.mxu0 0.0
        %517 = vmatpush1.msra.mxu0 %v482
        %518 = vmatprep.subr.mxu0 0.0
        %519 = vmatpush1.msra.mxu0 %v483
        %520 = vmatprep.subr.mxu0 0.0
        %521 = vmatpush1.msra.mxu0 %v484
        %522 = vmatprep.subr.mxu0 0.0
        %523 = vmatpush1.msra.mxu0 %v485
        %524 = vmatprep.subr.mxu0 0.0
        %525 = vmatpush1.msra.mxu0 %v486
        %526 = vmatprep.subr.mxu0 0.0
        %527 = vmatpush1.msra.mxu0 0.0
        %528 = vmatprep.subr.mxu0 0.0
        %529 = vmatpush1.msra.mxu0 0.0
        %530 = vmatprep.subr.mxu0 0.0
        %531 = vmatpush1.msra.mxu0 0.0
        %532 = vmatprep.subr.mxu0 0.0
        %533 = vmatpush1.msra.mxu0 0.0
        %534 = vmatprep.subr.mxu0 0.0
        %535 = vmatpush1.msra.mxu0 0.0
        %536 = vmatprep.subr.mxu0 0.0
        %537 = vmatpush1.msra.mxu0 0.0
        %538 = vmatprep.subr.mxu0 0.0
        %539 = vmatpush1.msra.mxu0 0.0
        %540 = vmatprep.subr.mxu0 0.0
        %541 = vmatpush1.msra.mxu0 0.0
        %542 = vmatprep.subr.mxu0 0.0
        %543 = vmatpush1.msra.mxu0 0.0
        %544 = vmatprep.subr.mxu0 0.0
        %545 = vmatpush1.msra.mxu0 0.0
        %546 = vmatprep.subr.mxu0 0.0
        %547 = vmatpush1.msra.mxu0 0.0
        %548 = vmatprep.subr.mxu0 0.0
        %549 = vmatpush1.msra.mxu0 0.0
        %550 = vmatprep.subr.mxu0 0.0
        %551 = vmatpush1.msra.mxu0 0.0
        %552 = vmatprep.subr.mxu0 0.0
        %553 = vmatpush1.msra.mxu0 0.0
        %554 = vmatprep.subr.mxu0 0.0
        %555 = vmatpush1.msra.mxu0 0.0
        %556 = vmatprep.subr.mxu0 0.0
        %557 = vmatpush1.msra.mxu0 0.0
        %558 = vmatprep.mubr.f32.mxu0 0.0
        %559 = vmatmul.mubr.f32.gmra.mrb[0].mxu0 %v439
        %v560 = vpop.f32.mrb[0].mxu0
        %v561 = vadd.f32 %v492, %v560
        %v562 = vpop.f32.mrb[0].mxu0
        %563 = vmatprep.mubr.f32.mxu0 0.0
        %564 = vmatmul.mubr.f32.gmra.mrb[0].mxu0 %v440
        %v565 = vpop.f32.mrb[0].mxu0
        %v566 = vadd.f32 %v492, %v565
        %v567 = vpop.f32.mrb[0].mxu0
        %568 = vmatprep.mubr.f32.mxu0 0.0
        %569 = vmatmul.mubr.f32.gmra.mrb[0].mxu0 %v441
        %v570 = vpop.f32.mrb[0].mxu0
        %v571 = vadd.f32 %v492, %v570
        %v572 = vpop.f32.mrb[0].mxu0
        %573 = vmatprep.mubr.f32.mxu0 0.0
        %574 = vmatmul.mubr.f32.gmra.mrb[0].mxu0 %v442
        %v575 = vpop.f32.mrb[0].mxu0
        %v576 = vadd.f32 %v492, %v575
        %v577 = vpop.f32.mrb[0].mxu0
        %578 = vmatprep.mubr.f32.mxu0 0.0
        %579 = vmatmul.mubr.f32.gmra.mrb[0].mxu0 %v443
        %v580 = vpop.f32.mrb[0].mxu0
        %v581 = vadd.f32 %v492, %v580
        %v582 = vpop.f32.mrb[0].mxu0
        %583 = vmatprep.mubr.f32.mxu0 0.0
        %584 = vmatmul.mubr.f32.gmra.mrb[0].mxu0 %v444
        %v585 = vpop.f32.mrb[0].mxu0
        %v586 = vadd.f32 %v492, %v585
        %v587 = vpop.f32.mrb[0].mxu0
        %588 = vmatprep.mubr.f32.mxu0 0.0
        %589 = vmatmul.mubr.f32.gmra.mrb[0].mxu0 %v445
        %v590 = vpop.f32.mrb[0].mxu0
        %v591 = vadd.f32 %v492, %v590
        %v592 = vpop.f32.mrb[0].mxu0
        %593 = vmatprep.mubr.f32.mxu0 0.0
        %594 = vmatmul.mubr.f32.gmra.mrb[0].mxu0 %v446
        %v595 = vpop.f32.mrb[0].mxu0
        %v596 = vadd.f32 %v492, %v595
        %v597 = vpop.f32.mrb[0].mxu0
        %598 = vmatprep.mubr.f32.mxu0 0.0
        %599 = vmatmul.mubr.f32.gmra.mrb[0].mxu0 %v447
        %v600 = vpop.f32.mrb[0].mxu0
        %v601 = vadd.f32 %v492, %v600
        %v602 = vpop.f32.mrb[0].mxu0
        %603 = vmatprep.mubr.f32.mxu0 0.0
        %604 = vmatmul.mubr.f32.gmra.mrb[0].mxu0 %v448
        %v605 = vpop.f32.mrb[0].mxu0
        %v606 = vadd.f32 %v492, %v605
        %v607 = vpop.f32.mrb[0].mxu0
        %608 = vmatprep.mubr.f32.mxu0 0.0
        %609 = vmatmul.mubr.f32.gmra.mrb[0].mxu0 %v449
        %v610 = vpop.f32.mrb[0].mxu0
        %v611 = vadd.f32 %v492, %v610
        %v612 = vpop.f32.mrb[0].mxu0
        %613 = vmatprep.mubr.f32.mxu0 0.0
        %614 = vmatmul.mubr.f32.gmra.mrb[0].mxu0 %v450
        %v615 = vpop.f32.mrb[0].mxu0
        %v616 = vadd.f32 %v492, %v615
        %v617 = vpop.f32.mrb[0].mxu0
        %618 = vmatprep.mubr.f32.mxu0 0.0
        %619 = vmatmul.mubr.f32.gmra.mrb[0].mxu0 %v451
        %v620 = vpop.f32.mrb[0].mxu0
        %v621 = vadd.f32 %v492, %v620
        %v622 = vpop.f32.mrb[0].mxu0
        %623 = vmatprep.mubr.f32.mxu0 0.0
        %624 = vmatmul.mubr.f32.gmra.mrb[0].mxu0 %v452
        %v625 = vpop.f32.mrb[0].mxu0
        %v626 = vadd.f32 %v492, %v625
        %v627 = vpop.f32.mrb[0].mxu0
        %628 = vmatprep.mubr.f32.mxu0 0.0
        %629 = vmatmul.mubr.f32.gmra.mrb[0].mxu0 %v453
        %v630 = vpop.f32.mrb[0].mxu0
        %v631 = vadd.f32 %v492, %v630
        %v632 = vpop.f32.mrb[0].mxu0
        %633 = vmatprep.mubr.f32.mxu0 0.0
        %634 = vmatmul.mubr.f32.gmra.mrb[0].mxu0 %v454
        %v635 = vpop.f32.mrb[0].mxu0
        %v636 = vadd.f32 %v492, %v635
        %v637 = vpop.f32.mrb[0].mxu0
        %638 = vmatprep.mubr.f32.mxu0 0.0
        %639 = vmatmul.mubr.f32.gmra.mrb[0].mxu0 %v455
        %v640 = vpop.f32.mrb[0].mxu0
        %v641 = vadd.f32 %v492, %v640
        %v642 = vpop.f32.mrb[0].mxu0
        %643 = vmatprep.mubr.f32.mxu0 0.0
        %644 = vmatmul.mubr.f32.gmra.mrb[0].mxu0 %v456
        %v645 = vpop.f32.mrb[0].mxu0
        %v646 = vadd.f32 %v492, %v645
        %v647 = vpop.f32.mrb[0].mxu0
        %648 = vmatprep.mubr.f32.mxu0 0.0
        %649 = vmatmul.mubr.f32.gmra.mrb[0].mxu0 %v457
        %v650 = vpop.f32.mrb[0].mxu0
        %v651 = vadd.f32 %v492, %v650
        %v652 = vpop.f32.mrb[0].mxu0
        %653 = vmatprep.mubr.f32.mxu0 0.0
        %654 = vmatmul.mubr.f32.gmra.mrb[0].mxu0 %v458
        %v655 = vpop.f32.mrb[0].mxu0
        %v656 = vadd.f32 %v492, %v655
        %v657 = vpop.f32.mrb[0].mxu0
        %658 = vmatprep.mubr.f32.mxu0 0.0
        %659 = vmatmul.mubr.f32.gmra.mrb[0].mxu0 %v459
        %v660 = vpop.f32.mrb[0].mxu0
        %v661 = vadd.f32 %v492, %v660
        %v662 = vpop.f32.mrb[0].mxu0
        %663 = vmatprep.mubr.f32.mxu0 0.0
        %664 = vmatmul.mubr.f32.gmra.mrb[0].mxu0 %v460
        %v665 = vpop.f32.mrb[0].mxu0
        %v666 = vadd.f32 %v492, %v665
        %v667 = vpop.f32.mrb[0].mxu0
        %668 = vmatprep.mubr.f32.mxu0 0.0
        %669 = vmatmul.mubr.f32.gmra.mrb[0].mxu0 %v461
        %v670 = vpop.f32.mrb[0].mxu0
        %v671 = vadd.f32 %v492, %v670
        %v672 = vpop.f32.mrb[0].mxu0
        %673 = vmatprep.mubr.f32.mxu0 0.0
        %674 = vmatmul.mubr.f32.gmra.mrb[0].mxu0 %v462
        %v675 = vpop.f32.mrb[0].mxu0
        %v676 = vadd.f32 %v492, %v675
        %v677 = vpop.f32.mrb[0].mxu0
        %678 = vmatprep.mubr.f32.mxu0 0.0
        %679 = vmatmul.mubr.f32.gmra.mrb[0].mxu0 %v463
        %v680 = vpop.f32.mrb[0].mxu0
        %v681 = vadd.f32 %v492, %v680
        %v682 = vpop.f32.mrb[0].mxu0
        %683 = vmatprep.mubr.f32.mxu0 0.0
        %684 = vmatmul.mubr.f32.gmra.mrb[0].mxu0 %v464
        %v685 = vpop.f32.mrb[0].mxu0
        %v686 = vadd.f32 %v492, %v685
        %v687 = vpop.f32.mrb[0].mxu0
        %688 = vmatprep.mubr.f32.mxu0 0.0
        %689 = vmatmul.mubr.f32.gmra.mrb[0].mxu0 %v465
        %v690 = vpop.f32.mrb[0].mxu0
        %v691 = vadd.f32 %v492, %v690
        %v692 = vpop.f32.mrb[0].mxu0
        %693 = vmatprep.mubr.f32.mxu0 0.0
        %694 = vmatmul.mubr.f32.gmra.mrb[0].mxu0 %v466
        %v695 = vpop.f32.mrb[0].mxu0
        %v696 = vadd.f32 %v492, %v695
        %v697 = vpop.f32.mrb[0].mxu0
        %698 = vmatprep.mubr.f32.mxu0 0.0
        %699 = vmatmul.mubr.f32.gmra.mrb[0].mxu0 %v467
        %v700 = vpop.f32.mrb[0].mxu0
        %v701 = vadd.f32 %v492, %v700
        %v702 = vpop.f32.mrb[0].mxu0
        %703 = vmatprep.mubr.f32.mxu0 0.0
        %704 = vmatmul.mubr.f32.gmra.mrb[0].mxu0 %v468
        %v705 = vpop.f32.mrb[0].mxu0
        %v706 = vadd.f32 %v492, %v705
        %v707 = vpop.f32.mrb[0].mxu0
        %708 = vmatprep.mubr.f32.mxu0 0.0
        %709 = vmatmul.mubr.f32.gmra.mrb[0].mxu0 %v469
        %v710 = vpop.f32.mrb[0].mxu0
        %v711 = vadd.f32 %v492, %v710
        %v712 = vpop.f32.mrb[0].mxu0
        %713 = vmatprep.mubr.f32.mxu0 0.0
        %714 = vmatmul.mubr.f32.gmra.mrb[0].mxu0 %v470
        %v715 = vpop.f32.mrb[0].mxu0
        %v716 = vadd.f32 %v492, %v715
        %v717 = vpop.f32.mrb[0].mxu0
        %718 = vdwg.mxu0
        %v719 = vld [vmem:[#allocation7] sm:$0xff]
        %v720 = vld [vmem:[#allocation7 + $0x8] sm:$0xff]
        %v721 = vld [vmem:[#allocation7 + $0x10] sm:$0xff]
        %v722 = vld [vmem:[#allocation7 + $0x18] sm:$0xff]
        %v723 = vld [vmem:[#allocation7 + $0x20] sm:$0xff]
        %v724 = vld [vmem:[#allocation7 + $0x28] sm:$0xff]
        %v725 = vld [vmem:[#allocation7 + $0x30] sm:$0xff]
        %v726 = vld [vmem:[#allocation7 + $0x38] sm:$0xff]
        %v727 = vld [vmem:[#allocation7 + $0x40] sm:$0xff]
        %v728 = vld [vmem:[#allocation7 + $0x48] sm:$0xff]
        %v729 = vld [vmem:[#allocation7 + $0x50] sm:$0xff]
        %v730 = vld [vmem:[#allocation7 + $0x58] sm:$0xff]
        %v731 = vld [vmem:[#allocation7 + $0x60] sm:$0xff]
        %v732 = vld [vmem:[#allocation7 + $0x68] sm:$0xff]
        %v733 = vld [vmem:[#allocation7 + $0x70] sm:$0xff]
        %v734 = vld [vmem:[#allocation7 + $0x78] sm:$0xff]
        %v735 = vld [vmem:[%s4] sm:$0x1]
        %v737 = vlaneseq
        %v738 = vshrl.u32 %v737, 7
        %v739 = vsub.s32 0, %v738
        %v740 = vrot.slane %v735, %v739
        %742 = vmatprep.subr.mxu0 0.0
        %743 = vmatpush1.msra.mxu0 %v719
        %744 = vmatprep.subr.mxu0 0.0
        %745 = vmatpush1.msra.mxu0 %v720
        %746 = vmatprep.subr.mxu0 0.0
        %747 = vmatpush1.msra.mxu0 %v721
        %748 = vmatprep.subr.mxu0 0.0
        %749 = vmatpush1.msra.mxu0 %v722
        %750 = vmatprep.subr.mxu0 0.0
        %751 = vmatpush1.msra.mxu0 %v723
        %752 = vmatprep.subr.mxu0 0.0
        %753 = vmatpush1.msra.mxu0 %v724
        %754 = vmatprep.subr.mxu0 0.0
        %755 = vmatpush1.msra.mxu0 %v725
        %756 = vmatprep.subr.mxu0 0.0
        %757 = vmatpush1.msra.mxu0 %v726
        %758 = vmatprep.subr.mxu0 0.0
        %759 = vmatpush1.msra.mxu0 %v727
        %760 = vmatprep.subr.mxu0 0.0
        %761 = vmatpush1.msra.mxu0 %v728
        %762 = vmatprep.subr.mxu0 0.0
        %763 = vmatpush1.msra.mxu0 %v729
        %764 = vmatprep.subr.mxu0 0.0
        %765 = vmatpush1.msra.mxu0 %v730
        %766 = vmatprep.subr.mxu0 0.0
        %767 = vmatpush1.msra.mxu0 %v731
        %768 = vmatprep.subr.mxu0 0.0
        %769 = vmatpush1.msra.mxu0 %v732
        %770 = vmatprep.subr.mxu0 0.0
        %771 = vmatpush1.msra.mxu0 %v733
        %772 = vmatprep.subr.mxu0 0.0
        %773 = vmatpush1.msra.mxu0 %v734
        %774 = vmatprep.subr.mxu0 0.0
        %775 = vmatpush1.msra.mxu0 0.0
        %776 = vmatprep.subr.mxu0 0.0
        %777 = vmatpush1.msra.mxu0 0.0
        %778 = vmatprep.subr.mxu0 0.0
        %779 = vmatpush1.msra.mxu0 0.0
        %780 = vmatprep.subr.mxu0 0.0
        %781 = vmatpush1.msra.mxu0 0.0
        %782 = vmatprep.subr.mxu0 0.0
        %783 = vmatpush1.msra.mxu0 0.0
        %784 = vmatprep.subr.mxu0 0.0
        %785 = vmatpush1.msra.mxu0 0.0
        %786 = vmatprep.subr.mxu0 0.0
        %787 = vmatpush1.msra.mxu0 0.0
        %788 = vmatprep.subr.mxu0 0.0
        %789 = vmatpush1.msra.mxu0 0.0
        %790 = vmatprep.subr.mxu0 0.0
        %791 = vmatpush1.msra.mxu0 0.0
        %792 = vmatprep.subr.mxu0 0.0
        %793 = vmatpush1.msra.mxu0 0.0
        %794 = vmatprep.subr.mxu0 0.0
        %795 = vmatpush1.msra.mxu0 0.0
        %796 = vmatprep.subr.mxu0 0.0
        %797 = vmatpush1.msra.mxu0 0.0
        %798 = vmatprep.subr.mxu0 0.0
        %799 = vmatpush1.msra.mxu0 0.0
        %800 = vmatprep.subr.mxu0 0.0
        %801 = vmatpush1.msra.mxu0 0.0
        %802 = vmatprep.subr.mxu0 0.0
        %803 = vmatpush1.msra.mxu0 0.0
        %804 = vmatprep.subr.mxu0 0.0
        %805 = vmatpush1.msra.mxu0 0.0
        %806 = vmatprep.mubr.f32.mxu0 0.0
        %807 = vmatmul.mubr.f32.gmra.mrb[0].mxu0 %v439
        %v808 = vpop.f32.mrb[0].mxu0
        %v809 = vadd.f32 %v740, %v808
        %v810 = vpop.f32.mrb[0].mxu0
        %811 = vmatprep.mubr.f32.mxu0 0.0
        %812 = vmatmul.mubr.f32.gmra.mrb[0].mxu0 %v440
        %v813 = vpop.f32.mrb[0].mxu0
        %v814 = vadd.f32 %v740, %v813
        %v815 = vpop.f32.mrb[0].mxu0
        %816 = vmatprep.mubr.f32.mxu0 0.0
        %817 = vmatmul.mubr.f32.gmra.mrb[0].mxu0 %v441
        %v818 = vpop.f32.mrb[0].mxu0
        %v819 = vadd.f32 %v740, %v818
        %v820 = vpop.f32.mrb[0].mxu0
        %821 = vmatprep.mubr.f32.mxu0 0.0
        %822 = vmatmul.mubr.f32.gmra.mrb[0].mxu0 %v442
        %v823 = vpop.f32.mrb[0].mxu0
        %v824 = vadd.f32 %v740, %v823
        %v825 = vpop.f32.mrb[0].mxu0
        %826 = vmatprep.mubr.f32.mxu0 0.0
        %827 = vmatmul.mubr.f32.gmra.mrb[0].mxu0 %v443
        %v828 = vpop.f32.mrb[0].mxu0
        %v829 = vadd.f32 %v740, %v828
        %v830 = vpop.f32.mrb[0].mxu0
        %831 = vmatprep.mubr.f32.mxu0 0.0
        %832 = vmatmul.mubr.f32.gmra.mrb[0].mxu0 %v444
        %v833 = vpop.f32.mrb[0].mxu0
        %v834 = vadd.f32 %v740, %v833
        %v835 = vpop.f32.mrb[0].mxu0
        %836 = vmatprep.mubr.f32.mxu0 0.0
        %837 = vmatmul.mubr.f32.gmra.mrb[0].mxu0 %v445
        %v838 = vpop.f32.mrb[0].mxu0
        %v839 = vadd.f32 %v740, %v838
        %v840 = vpop.f32.mrb[0].mxu0
        %841 = vmatprep.mubr.f32.mxu0 0.0
        %842 = vmatmul.mubr.f32.gmra.mrb[0].mxu0 %v446
        %v843 = vpop.f32.mrb[0].mxu0
        %v844 = vadd.f32 %v740, %v843
        %v845 = vpop.f32.mrb[0].mxu0
        %846 = vmatprep.mubr.f32.mxu0 0.0
        %847 = vmatmul.mubr.f32.gmra.mrb[0].mxu0 %v447
        %v848 = vpop.f32.mrb[0].mxu0
        %v849 = vadd.f32 %v740, %v848
        %v850 = vpop.f32.mrb[0].mxu0
        %851 = vmatprep.mubr.f32.mxu0 0.0
        %852 = vmatmul.mubr.f32.gmra.mrb[0].mxu0 %v448
        %v853 = vpop.f32.mrb[0].mxu0
        %v854 = vadd.f32 %v740, %v853
        %v855 = vpop.f32.mrb[0].mxu0
        %856 = vmatprep.mubr.f32.mxu0 0.0
        %857 = vmatmul.mubr.f32.gmra.mrb[0].mxu0 %v449
        %v858 = vpop.f32.mrb[0].mxu0
        %v859 = vadd.f32 %v740, %v858
        %v860 = vpop.f32.mrb[0].mxu0
        %861 = vmatprep.mubr.f32.mxu0 0.0
        %862 = vmatmul.mubr.f32.gmra.mrb[0].mxu0 %v450
        %v863 = vpop.f32.mrb[0].mxu0
        %v864 = vadd.f32 %v740, %v863
        %v865 = vpop.f32.mrb[0].mxu0
        %866 = vmatprep.mubr.f32.mxu0 0.0
        %867 = vmatmul.mubr.f32.gmra.mrb[0].mxu0 %v451
        %v868 = vpop.f32.mrb[0].mxu0
        %v869 = vadd.f32 %v740, %v868
        %v870 = vpop.f32.mrb[0].mxu0
        %871 = vmatprep.mubr.f32.mxu0 0.0
        %872 = vmatmul.mubr.f32.gmra.mrb[0].mxu0 %v452
        %v873 = vpop.f32.mrb[0].mxu0
        %v874 = vadd.f32 %v740, %v873
        %v875 = vpop.f32.mrb[0].mxu0
        %876 = vmatprep.mubr.f32.mxu0 0.0
        %877 = vmatmul.mubr.f32.gmra.mrb[0].mxu0 %v453
        %v878 = vpop.f32.mrb[0].mxu0
        %v879 = vadd.f32 %v740, %v878
        %v880 = vpop.f32.mrb[0].mxu0
        %881 = vmatprep.mubr.f32.mxu0 0.0
        %882 = vmatmul.mubr.f32.gmra.mrb[0].mxu0 %v454
        %v883 = vpop.f32.mrb[0].mxu0
        %v884 = vadd.f32 %v740, %v883
        %v885 = vpop.f32.mrb[0].mxu0
        %886 = vmatprep.mubr.f32.mxu0 0.0
        %887 = vmatmul.mubr.f32.gmra.mrb[0].mxu0 %v455
        %v888 = vpop.f32.mrb[0].mxu0
        %v889 = vadd.f32 %v740, %v888
        %v890 = vpop.f32.mrb[0].mxu0
        %891 = vmatprep.mubr.f32.mxu0 0.0
        %892 = vmatmul.mubr.f32.gmra.mrb[0].mxu0 %v456
        %v893 = vpop.f32.mrb[0].mxu0
        %v894 = vadd.f32 %v740, %v893
        %v895 = vpop.f32.mrb[0].mxu0
        %896 = vmatprep.mubr.f32.mxu0 0.0
        %897 = vmatmul.mubr.f32.gmra.mrb[0].mxu0 %v457
        %v898 = vpop.f32.mrb[0].mxu0
        %v899 = vadd.f32 %v740, %v898
        %v900 = vpop.f32.mrb[0].mxu0
        %901 = vmatprep.mubr.f32.mxu0 0.0
        %902 = vmatmul.mubr.f32.gmra.mrb[0].mxu0 %v458
        %v903 = vpop.f32.mrb[0].mxu0
        %v904 = vadd.f32 %v740, %v903
        %v905 = vpop.f32.mrb[0].mxu0
        %906 = vmatprep.mubr.f32.mxu0 0.0
        %907 = vmatmul.mubr.f32.gmra.mrb[0].mxu0 %v459
        %v908 = vpop.f32.mrb[0].mxu0
        %v909 = vadd.f32 %v740, %v908
        %v910 = vpop.f32.mrb[0].mxu0
        %911 = vmatprep.mubr.f32.mxu0 0.0
        %912 = vmatmul.mubr.f32.gmra.mrb[0].mxu0 %v460
        %v913 = vpop.f32.mrb[0].mxu0
        %v914 = vadd.f32 %v740, %v913
        %v915 = vpop.f32.mrb[0].mxu0
        %916 = vmatprep.mubr.f32.mxu0 0.0
        %917 = vmatmul.mubr.f32.gmra.mrb[0].mxu0 %v461
        %v918 = vpop.f32.mrb[0].mxu0
        %v919 = vadd.f32 %v740, %v918
        %v920 = vpop.f32.mrb[0].mxu0
        %921 = vmatprep.mubr.f32.mxu0 0.0
        %922 = vmatmul.mubr.f32.gmra.mrb[0].mxu0 %v462
        %v923 = vpop.f32.mrb[0].mxu0
        %v924 = vadd.f32 %v740, %v923
        %v925 = vpop.f32.mrb[0].mxu0
        %926 = vmatprep.mubr.f32.mxu0 0.0
        %927 = vmatmul.mubr.f32.gmra.mrb[0].mxu0 %v463
        %v928 = vpop.f32.mrb[0].mxu0
        %v929 = vadd.f32 %v740, %v928
        %v930 = vpop.f32.mrb[0].mxu0
        %931 = vmatprep.mubr.f32.mxu0 0.0
        %932 = vmatmul.mubr.f32.gmra.mrb[0].mxu0 %v464
        %v933 = vpop.f32.mrb[0].mxu0
        %v934 = vadd.f32 %v740, %v933
        %v935 = vpop.f32.mrb[0].mxu0
        %936 = vmatprep.mubr.f32.mxu0 0.0
        %937 = vmatmul.mubr.f32.gmra.mrb[0].mxu0 %v465
        %v938 = vpop.f32.mrb[0].mxu0
        %v939 = vadd.f32 %v740, %v938
        %v940 = vpop.f32.mrb[0].mxu0
        %941 = vmatprep.mubr.f32.mxu0 0.0
        %942 = vmatmul.mubr.f32.gmra.mrb[0].mxu0 %v466
        %v943 = vpop.f32.mrb[0].mxu0
        %v944 = vadd.f32 %v740, %v943
        %v945 = vpop.f32.mrb[0].mxu0
        %946 = vmatprep.mubr.f32.mxu0 0.0
        %947 = vmatmul.mubr.f32.gmra.mrb[0].mxu0 %v467
        %v948 = vpop.f32.mrb[0].mxu0
        %v949 = vadd.f32 %v740, %v948
        %v950 = vpop.f32.mrb[0].mxu0
        %951 = vmatprep.mubr.f32.mxu0 0.0
        %952 = vmatmul.mubr.f32.gmra.mrb[0].mxu0 %v468
        %v953 = vpop.f32.mrb[0].mxu0
        %v954 = vadd.f32 %v740, %v953
        %v955 = vpop.f32.mrb[0].mxu0
        %956 = vmatprep.mubr.f32.mxu0 0.0
        %957 = vmatmul.mubr.f32.gmra.mrb[0].mxu0 %v469
        %v958 = vpop.f32.mrb[0].mxu0
        %v959 = vadd.f32 %v740, %v958
        %v960 = vpop.f32.mrb[0].mxu0
        %961 = vmatprep.mubr.f32.mxu0 0.0
        %962 = vmatmul.mubr.f32.gmra.mrb[0].mxu0 %v470
        %v963 = vpop.f32.mrb[0].mxu0
        %v964 = vadd.f32 %v740, %v963
        %v965 = vpop.f32.mrb[0].mxu0
        %966 = vdwg.mxu0
        %v967 = vld [vmem:[#allocation8] sm:$0xff]
        %v968 = vld [vmem:[#allocation8 + $0x8] sm:$0xff]
        %v969 = vld [vmem:[#allocation8 + $0x10] sm:$0xff]
        %v970 = vld [vmem:[#allocation8 + $0x18] sm:$0xff]
        %v971 = vld [vmem:[#allocation8 + $0x20] sm:$0xff]
        %v972 = vld [vmem:[#allocation8 + $0x28] sm:$0xff]
        %v973 = vld [vmem:[#allocation8 + $0x30] sm:$0xff]
        %v974 = vld [vmem:[#allocation8 + $0x38] sm:$0xff]
        %v975 = vld [vmem:[#allocation8 + $0x40] sm:$0xff]
        %v976 = vld [vmem:[#allocation8 + $0x48] sm:$0xff]
        %v977 = vld [vmem:[#allocation8 + $0x50] sm:$0xff]
        %v978 = vld [vmem:[#allocation8 + $0x58] sm:$0xff]
        %v979 = vld [vmem:[#allocation8 + $0x60] sm:$0xff]
        %v980 = vld [vmem:[#allocation8 + $0x68] sm:$0xff]
        %v981 = vld [vmem:[#allocation8 + $0x70] sm:$0xff]
        %v982 = vld [vmem:[#allocation8 + $0x78] sm:$0xff]
        %v983 = vld [vmem:[%s6] sm:$0x1]
        %v985 = vlaneseq
        %v986 = vshrl.u32 %v985, 7
        %v987 = vsub.s32 0, %v986
        %v988 = vrot.slane %v983, %v987
        %990 = vmatprep.subr.mxu0 0.0
        %991 = vmatpush1.msra.mxu0 %v967
        %992 = vmatprep.subr.mxu0 0.0
        %993 = vmatpush1.msra.mxu0 %v968
        %994 = vmatprep.subr.mxu0 0.0
        %995 = vmatpush1.msra.mxu0 %v969
        %996 = vmatprep.subr.mxu0 0.0
        %997 = vmatpush1.msra.mxu0 %v970
        %998 = vmatprep.subr.mxu0 0.0
        %999 = vmatpush1.msra.mxu0 %v971
        %1000 = vmatprep.subr.mxu0 0.0
        %1001 = vmatpush1.msra.mxu0 %v972
        %1002 = vmatprep.subr.mxu0 0.0
        %1003 = vmatpush1.msra.mxu0 %v973
        %1004 = vmatprep.subr.mxu0 0.0
        %1005 = vmatpush1.msra.mxu0 %v974
        %1006 = vmatprep.subr.mxu0 0.0
        %1007 = vmatpush1.msra.mxu0 %v975
        %1008 = vmatprep.subr.mxu0 0.0
        %1009 = vmatpush1.msra.mxu0 %v976
        %1010 = vmatprep.subr.mxu0 0.0
        %1011 = vmatpush1.msra.mxu0 %v977
        %1012 = vmatprep.subr.mxu0 0.0
        %1013 = vmatpush1.msra.mxu0 %v978
        %1014 = vmatprep.subr.mxu0 0.0
        %1015 = vmatpush1.msra.mxu0 %v979
        %1016 = vmatprep.subr.mxu0 0.0
        %1017 = vmatpush1.msra.mxu0 %v980
        %1018 = vmatprep.subr.mxu0 0.0
        %1019 = vmatpush1.msra.mxu0 %v981
        %1020 = vmatprep.subr.mxu0 0.0
        %1021 = vmatpush1.msra.mxu0 %v982
        %1022 = vmatprep.subr.mxu0 0.0
        %1023 = vmatpush1.msra.mxu0 0.0
        %1024 = vmatprep.subr.mxu0 0.0
        %1025 = vmatpush1.msra.mxu0 0.0
        %1026 = vmatprep.subr.mxu0 0.0
        %1027 = vmatpush1.msra.mxu0 0.0
        %1028 = vmatprep.subr.mxu0 0.0
        %1029 = vmatpush1.msra.mxu0 0.0
        %1030 = vmatprep.subr.mxu0 0.0
        %1031 = vmatpush1.msra.mxu0 0.0
        %1032 = vmatprep.subr.mxu0 0.0
        %1033 = vmatpush1.msra.mxu0 0.0
        %1034 = vmatprep.subr.mxu0 0.0
        %1035 = vmatpush1.msra.mxu0 0.0
        %1036 = vmatprep.subr.mxu0 0.0
        %1037 = vmatpush1.msra.mxu0 0.0
        %1038 = vmatprep.subr.mxu0 0.0
        %1039 = vmatpush1.msra.mxu0 0.0
        %1040 = vmatprep.subr.mxu0 0.0
        %1041 = vmatpush1.msra.mxu0 0.0
        %1042 = vmatprep.subr.mxu0 0.0
        %1043 = vmatpush1.msra.mxu0 0.0
        %1044 = vmatprep.subr.mxu0 0.0
        %1045 = vmatpush1.msra.mxu0 0.0
        %1046 = vmatprep.subr.mxu0 0.0
        %1047 = vmatpush1.msra.mxu0 0.0
        %1048 = vmatprep.subr.mxu0 0.0
        %1049 = vmatpush1.msra.mxu0 0.0
        %1050 = vmatprep.subr.mxu0 0.0
        %1051 = vmatpush1.msra.mxu0 0.0
        %1052 = vmatprep.subr.mxu0 0.0
        %1053 = vmatpush1.msra.mxu0 0.0
        %1054 = vmatprep.mubr.f32.mxu0 0.0
        %1055 = vmatmul.mubr.f32.gmra.mrb[0].mxu0 %v439
        %v1056 = vpop.f32.mrb[0].mxu0
        %v1057 = vadd.f32 %v988, %v1056
        %v1058 = vpop.f32.mrb[0].mxu0
        %1059 = vmatprep.mubr.f32.mxu0 0.0
        %1060 = vmatmul.mubr.f32.gmra.mrb[0].mxu0 %v440
        %v1061 = vpop.f32.mrb[0].mxu0
        %v1062 = vadd.f32 %v988, %v1061
        %v1063 = vpop.f32.mrb[0].mxu0
        %1064 = vmatprep.mubr.f32.mxu0 0.0
        %1065 = vmatmul.mubr.f32.gmra.mrb[0].mxu0 %v441
        %v1066 = vpop.f32.mrb[0].mxu0
        %v1067 = vadd.f32 %v988, %v1066
        %v1068 = vpop.f32.mrb[0].mxu0
        %1069 = vmatprep.mubr.f32.mxu0 0.0
        %1070 = vmatmul.mubr.f32.gmra.mrb[0].mxu0 %v442
        %v1071 = vpop.f32.mrb[0].mxu0
        %v1072 = vadd.f32 %v988, %v1071
        %v1073 = vpop.f32.mrb[0].mxu0
        %1074 = vmatprep.mubr.f32.mxu0 0.0
        %1075 = vmatmul.mubr.f32.gmra.mrb[0].mxu0 %v443
        %v1076 = vpop.f32.mrb[0].mxu0
        %v1077 = vadd.f32 %v988, %v1076
        %v1078 = vpop.f32.mrb[0].mxu0
        %1079 = vmatprep.mubr.f32.mxu0 0.0
        %1080 = vmatmul.mubr.f32.gmra.mrb[0].mxu0 %v444
        %v1081 = vpop.f32.mrb[0].mxu0
        %v1082 = vadd.f32 %v988, %v1081
        %v1083 = vpop.f32.mrb[0].mxu0
        %1084 = vmatprep.mubr.f32.mxu0 0.0
        %1085 = vmatmul.mubr.f32.gmra.mrb[0].mxu0 %v445
        %v1086 = vpop.f32.mrb[0].mxu0
        %v1087 = vadd.f32 %v988, %v1086
        %v1088 = vpop.f32.mrb[0].mxu0
        %1089 = vmatprep.mubr.f32.mxu0 0.0
        %1090 = vmatmul.mubr.f32.gmra.mrb[0].mxu0 %v446
        %v1091 = vpop.f32.mrb[0].mxu0
        %v1092 = vadd.f32 %v988, %v1091
        %v1093 = vpop.f32.mrb[0].mxu0
        %1094 = vmatprep.mubr.f32.mxu0 0.0
        %1095 = vmatmul.mubr.f32.gmra.mrb[0].mxu0 %v447
        %v1096 = vpop.f32.mrb[0].mxu0
        %v1097 = vadd.f32 %v988, %v1096
        %v1098 = vpop.f32.mrb[0].mxu0
        %1099 = vmatprep.mubr.f32.mxu0 0.0
        %1100 = vmatmul.mubr.f32.gmra.mrb[0].mxu0 %v448
        %v1101 = vpop.f32.mrb[0].mxu0
        %v1102 = vadd.f32 %v988, %v1101
        %v1103 = vpop.f32.mrb[0].mxu0
        %1104 = vmatprep.mubr.f32.mxu0 0.0
        %1105 = vmatmul.mubr.f32.gmra.mrb[0].mxu0 %v449
        %v1106 = vpop.f32.mrb[0].mxu0
        %v1107 = vadd.f32 %v988, %v1106
        %v1108 = vpop.f32.mrb[0].mxu0
        %1109 = vmatprep.mubr.f32.mxu0 0.0
        %1110 = vmatmul.mubr.f32.gmra.mrb[0].mxu0 %v450
        %v1111 = vpop.f32.mrb[0].mxu0
        %v1112 = vadd.f32 %v988, %v1111
        %v1113 = vpop.f32.mrb[0].mxu0
        %1114 = vmatprep.mubr.f32.mxu0 0.0
        %1115 = vmatmul.mubr.f32.gmra.mrb[0].mxu0 %v451
        %v1116 = vpop.f32.mrb[0].mxu0
        %v1117 = vadd.f32 %v988, %v1116
        %v1118 = vpop.f32.mrb[0].mxu0
        %1119 = vmatprep.mubr.f32.mxu0 0.0
        %1120 = vmatmul.mubr.f32.gmra.mrb[0].mxu0 %v452
        %v1121 = vpop.f32.mrb[0].mxu0
        %v1122 = vadd.f32 %v988, %v1121
        %v1123 = vpop.f32.mrb[0].mxu0
        %1124 = vmatprep.mubr.f32.mxu0 0.0
        %1125 = vmatmul.mubr.f32.gmra.mrb[0].mxu0 %v453
        %v1126 = vpop.f32.mrb[0].mxu0
        %v1127 = vadd.f32 %v988, %v1126
        %v1128 = vpop.f32.mrb[0].mxu0
        %1129 = vmatprep.mubr.f32.mxu0 0.0
        %1130 = vmatmul.mubr.f32.gmra.mrb[0].mxu0 %v454
        %v1131 = vpop.f32.mrb[0].mxu0
        %v1132 = vadd.f32 %v988, %v1131
        %v1133 = vpop.f32.mrb[0].mxu0
        %1134 = vmatprep.mubr.f32.mxu0 0.0
        %1135 = vmatmul.mubr.f32.gmra.mrb[0].mxu0 %v455
        %v1136 = vpop.f32.mrb[0].mxu0
        %v1137 = vadd.f32 %v988, %v1136
        %v1138 = vpop.f32.mrb[0].mxu0
        %1139 = vmatprep.mubr.f32.mxu0 0.0
        %1140 = vmatmul.mubr.f32.gmra.mrb[0].mxu0 %v456
        %v1141 = vpop.f32.mrb[0].mxu0
        %v1142 = vadd.f32 %v988, %v1141
        %v1143 = vpop.f32.mrb[0].mxu0
        %1144 = vmatprep.mubr.f32.mxu0 0.0
        %1145 = vmatmul.mubr.f32.gmra.mrb[0].mxu0 %v457
        %v1146 = vpop.f32.mrb[0].mxu0
        %v1147 = vadd.f32 %v988, %v1146
        %v1148 = vpop.f32.mrb[0].mxu0
        %1149 = vmatprep.mubr.f32.mxu0 0.0
        %1150 = vmatmul.mubr.f32.gmra.mrb[0].mxu0 %v458
        %v1151 = vpop.f32.mrb[0].mxu0
        %v1152 = vadd.f32 %v988, %v1151
        %v1153 = vpop.f32.mrb[0].mxu0
        %1154 = vmatprep.mubr.f32.mxu0 0.0
        %1155 = vmatmul.mubr.f32.gmra.mrb[0].mxu0 %v459
        %v1156 = vpop.f32.mrb[0].mxu0
        %v1157 = vadd.f32 %v988, %v1156
        %v1158 = vpop.f32.mrb[0].mxu0
        %1159 = vmatprep.mubr.f32.mxu0 0.0
        %1160 = vmatmul.mubr.f32.gmra.mrb[0].mxu0 %v460
        %v1161 = vpop.f32.mrb[0].mxu0
        %v1162 = vadd.f32 %v988, %v1161
        %v1163 = vpop.f32.mrb[0].mxu0
        %1164 = vmatprep.mubr.f32.mxu0 0.0
        %1165 = vmatmul.mubr.f32.gmra.mrb[0].mxu0 %v461
        %v1166 = vpop.f32.mrb[0].mxu0
        %v1167 = vadd.f32 %v988, %v1166
        %v1168 = vpop.f32.mrb[0].mxu0
        %1169 = vmatprep.mubr.f32.mxu0 0.0
        %1170 = vmatmul.mubr.f32.gmra.mrb[0].mxu0 %v462
        %v1171 = vpop.f32.mrb[0].mxu0
        %v1172 = vadd.f32 %v988, %v1171
        %v1173 = vpop.f32.mrb[0].mxu0
        %1174 = vmatprep.mubr.f32.mxu0 0.0
        %1175 = vmatmul.mubr.f32.gmra.mrb[0].mxu0 %v463
        %v1176 = vpop.f32.mrb[0].mxu0
        %v1177 = vadd.f32 %v988, %v1176
        %v1178 = vpop.f32.mrb[0].mxu0
        %1179 = vmatprep.mubr.f32.mxu0 0.0
        %1180 = vmatmul.mubr.f32.gmra.mrb[0].mxu0 %v464
        %v1181 = vpop.f32.mrb[0].mxu0
        %v1182 = vadd.f32 %v988, %v1181
        %v1183 = vpop.f32.mrb[0].mxu0
        %1184 = vmatprep.mubr.f32.mxu0 0.0
        %1185 = vmatmul.mubr.f32.gmra.mrb[0].mxu0 %v465
        %v1186 = vpop.f32.mrb[0].mxu0
        %v1187 = vadd.f32 %v988, %v1186
        %v1188 = vpop.f32.mrb[0].mxu0
        %1189 = vmatprep.mubr.f32.mxu0 0.0
        %1190 = vmatmul.mubr.f32.gmra.mrb[0].mxu0 %v466
        %v1191 = vpop.f32.mrb[0].mxu0
        %v1192 = vadd.f32 %v988, %v1191
        %v1193 = vpop.f32.mrb[0].mxu0
        %1194 = vmatprep.mubr.f32.mxu0 0.0
        %1195 = vmatmul.mubr.f32.gmra.mrb[0].mxu0 %v467
        %v1196 = vpop.f32.mrb[0].mxu0
        %v1197 = vadd.f32 %v988, %v1196
        %v1198 = vpop.f32.mrb[0].mxu0
        %1199 = vmatprep.mubr.f32.mxu0 0.0
        %1200 = vmatmul.mubr.f32.gmra.mrb[0].mxu0 %v468
        %v1201 = vpop.f32.mrb[0].mxu0
        %v1202 = vadd.f32 %v988, %v1201
        %v1203 = vpop.f32.mrb[0].mxu0
        %1204 = vmatprep.mubr.f32.mxu0 0.0
        %1205 = vmatmul.mubr.f32.gmra.mrb[0].mxu0 %v469
        %v1206 = vpop.f32.mrb[0].mxu0
        %v1207 = vadd.f32 %v988, %v1206
        %v1208 = vpop.f32.mrb[0].mxu0
        %1209 = vmatprep.mubr.f32.mxu0 0.0
        %1210 = vmatmul.mubr.f32.gmra.mrb[0].mxu0 %v470
        %v1211 = vpop.f32.mrb[0].mxu0
        %v1212 = vadd.f32 %v988, %v1211
        %v1213 = vpop.f32.mrb[0].mxu0
        %1214 = vdwg.mxu0
        %v1215 = vpack.c.bf16 %v566, %v561
        %v1216 = vpack.c.bf16 %v576, %v571
        %v1217 = vpack.c.bf16 %v586, %v581
        %v1218 = vpack.c.bf16 %v596, %v591
        %v1219 = vpack.c.bf16 %v606, %v601
        %v1220 = vpack.c.bf16 %v616, %v611
        %v1221 = vpack.c.bf16 %v626, %v621
        %v1222 = vpack.c.bf16 %v636, %v631
        %v1223 = vpack.c.bf16 %v646, %v641
        %v1224 = vpack.c.bf16 %v656, %v651
        %v1225 = vpack.c.bf16 %v666, %v661
        %v1226 = vpack.c.bf16 %v676, %v671
        %v1227 = vpack.c.bf16 %v686, %v681
        %v1228 = vpack.c.bf16 %v696, %v691
        %v1229 = vpack.c.bf16 %v706, %v701
        %v1230 = vpack.c.bf16 %v716, %v711
        %v1247 = vunpack.c.l.b16 %v1215
        %v1248 = vunpack.c.h.b16 %v1215
        %v1249 = vunpack.c.l.b16 %v1216
        %v1250 = vunpack.c.h.b16 %v1216
        %v1251 = vunpack.c.l.b16 %v1217
        %v1252 = vunpack.c.h.b16 %v1217
        %v1253 = vunpack.c.l.b16 %v1218
        %v1254 = vunpack.c.h.b16 %v1218
        %v1255 = vunpack.c.l.b16 %v1219
        %v1256 = vunpack.c.h.b16 %v1219
        %v1257 = vunpack.c.l.b16 %v1220
        %v1258 = vunpack.c.h.b16 %v1220
        %v1259 = vunpack.c.l.b16 %v1221
        %v1260 = vunpack.c.h.b16 %v1221
        %v1261 = vunpack.c.l.b16 %v1222
        %v1262 = vunpack.c.h.b16 %v1222
        %v1263 = vunpack.c.l.b16 %v1223
        %v1264 = vunpack.c.h.b16 %v1223
        %v1265 = vunpack.c.l.b16 %v1224
        %v1266 = vunpack.c.h.b16 %v1224
        %v1267 = vunpack.c.l.b16 %v1225
        %v1268 = vunpack.c.h.b16 %v1225
        %v1269 = vunpack.c.l.b16 %v1226
        %v1270 = vunpack.c.h.b16 %v1226
        %v1271 = vunpack.c.l.b16 %v1227
        %v1272 = vunpack.c.h.b16 %v1227
        %v1273 = vunpack.c.l.b16 %v1228
        %v1274 = vunpack.c.h.b16 %v1228
        %v1275 = vunpack.c.l.b16 %v1229
        %v1276 = vunpack.c.h.b16 %v1229
        %v1277 = vunpack.c.l.b16 %v1230
        %v1278 = vunpack.c.h.b16 %v1230
        %v1279 = vpack.c.b16 %v1247, %v1247
        %v1280 = vpack.c.b16 %v1248, %v1248
        %v1281 = vpack.c.b16 %v1249, %v1249
        %v1282 = vpack.c.b16 %v1250, %v1250
        %v1283 = vpack.c.b16 %v1251, %v1251
        %v1284 = vpack.c.b16 %v1252, %v1252
        %v1285 = vpack.c.b16 %v1253, %v1253
        %v1286 = vpack.c.b16 %v1254, %v1254
        %v1287 = vpack.c.b16 %v1255, %v1255
        %v1288 = vpack.c.b16 %v1256, %v1256
        %v1289 = vpack.c.b16 %v1257, %v1257
        %v1290 = vpack.c.b16 %v1258, %v1258
        %v1291 = vpack.c.b16 %v1259, %v1259
        %v1292 = vpack.c.b16 %v1260, %v1260
        %v1293 = vpack.c.b16 %v1261, %v1261
        %v1294 = vpack.c.b16 %v1262, %v1262
        %v1295 = vpack.c.b16 %v1263, %v1263
        %v1296 = vpack.c.b16 %v1264, %v1264
        %v1297 = vpack.c.b16 %v1265, %v1265
        %v1298 = vpack.c.b16 %v1266, %v1266
        %v1299 = vpack.c.b16 %v1267, %v1267
        %v1300 = vpack.c.b16 %v1268, %v1268
        %v1301 = vpack.c.b16 %v1269, %v1269
        %v1302 = vpack.c.b16 %v1270, %v1270
        %v1303 = vpack.c.b16 %v1271, %v1271
        %v1304 = vpack.c.b16 %v1272, %v1272
        %v1305 = vpack.c.b16 %v1273, %v1273
        %v1306 = vpack.c.b16 %v1274, %v1274
        %v1307 = vpack.c.b16 %v1275, %v1275
        %v1308 = vpack.c.b16 %v1276, %v1276
        %v1309 = vpack.c.b16 %v1277, %v1277
        %v1310 = vpack.c.b16 %v1278, %v1278
        %1343 = vst [vmem:[%s420] sm:$0xf] %v1279
        %1344 = vst [vmem:[%s420 + $0x4] sm:$0xf] %v1280
        %1345 = vst [vmem:[%s420 + $0x8] sm:$0xf] %v1281
        %1346 = vst [vmem:[%s420 + $0xc] sm:$0xf] %v1282
        %1347 = vst [vmem:[%s420 + $0x10] sm:$0xf] %v1283
        %1348 = vst [vmem:[%s420 + $0x14] sm:$0xf] %v1284
        %1349 = vst [vmem:[%s420 + $0x18] sm:$0xf] %v1285
        %1350 = vst [vmem:[%s420 + $0x1c] sm:$0xf] %v1286
        %1351 = vst [vmem:[%s420 + $0x20] sm:$0xf] %v1287
        %1352 = vst [vmem:[%s420 + $0x24] sm:$0xf] %v1288
        %1353 = vst [vmem:[%s420 + $0x28] sm:$0xf] %v1289
        %1354 = vst [vmem:[%s420 + $0x2c] sm:$0xf] %v1290
        %1355 = vst [vmem:[%s420 + $0x30] sm:$0xf] %v1291
        %1356 = vst [vmem:[%s420 + $0x34] sm:$0xf] %v1292
        %1357 = vst [vmem:[%s420 + $0x38] sm:$0xf] %v1293
        %1358 = vst [vmem:[%s420 + $0x3c] sm:$0xf] %v1294
        %1359 = vst [vmem:[%s420 + $0x40] sm:$0xf] %v1295
        %1360 = vst [vmem:[%s420 + $0x44] sm:$0xf] %v1296
        %1361 = vst [vmem:[%s420 + $0x48] sm:$0xf] %v1297
        %1362 = vst [vmem:[%s420 + $0x4c] sm:$0xf] %v1298
        %1363 = vst [vmem:[%s420 + $0x50] sm:$0xf] %v1299
        %1364 = vst [vmem:[%s420 + $0x54] sm:$0xf] %v1300
        %1365 = vst [vmem:[%s420 + $0x58] sm:$0xf] %v1301
        %1366 = vst [vmem:[%s420 + $0x5c] sm:$0xf] %v1302
        %1367 = vst [vmem:[%s420 + $0x60] sm:$0xf] %v1303
        %1368 = vst [vmem:[%s420 + $0x64] sm:$0xf] %v1304
        %1369 = vst [vmem:[%s420 + $0x68] sm:$0xf] %v1305
        %1370 = vst [vmem:[%s420 + $0x6c] sm:$0xf] %v1306
        %1371 = vst [vmem:[%s420 + $0x70] sm:$0xf] %v1307
        %1372 = vst [vmem:[%s420 + $0x74] sm:$0xf] %v1308
        %1373 = vst [vmem:[%s420 + $0x78] sm:$0xf] %v1309
        %1374 = vst [vmem:[%s420 + $0x7c] sm:$0xf] %v1310
        %v1375 = vpack.c.bf16 %v814, %v809
        %v1376 = vpack.c.bf16 %v824, %v819
        %v1377 = vpack.c.bf16 %v834, %v829
        %v1378 = vpack.c.bf16 %v844, %v839
        %v1379 = vpack.c.bf16 %v854, %v849
        %v1380 = vpack.c.bf16 %v864, %v859
        %v1381 = vpack.c.bf16 %v874, %v869
        %v1382 = vpack.c.bf16 %v884, %v879
        %v1383 = vpack.c.bf16 %v894, %v889
        %v1384 = vpack.c.bf16 %v904, %v899
        %v1385 = vpack.c.bf16 %v914, %v909
        %v1386 = vpack.c.bf16 %v924, %v919
        %v1387 = vpack.c.bf16 %v934, %v929
        %v1388 = vpack.c.bf16 %v944, %v939
        %v1389 = vpack.c.bf16 %v954, %v949
        %v1390 = vpack.c.bf16 %v964, %v959
        %v1407 = vunpack.c.l.b16 %v1375
        %v1408 = vunpack.c.h.b16 %v1375
        %v1409 = vunpack.c.l.b16 %v1376
        %v1410 = vunpack.c.h.b16 %v1376
        %v1411 = vunpack.c.l.b16 %v1377
        %v1412 = vunpack.c.h.b16 %v1377
        %v1413 = vunpack.c.l.b16 %v1378
        %v1414 = vunpack.c.h.b16 %v1378
        %v1415 = vunpack.c.l.b16 %v1379
        %v1416 = vunpack.c.h.b16 %v1379
        %v1417 = vunpack.c.l.b16 %v1380
        %v1418 = vunpack.c.h.b16 %v1380
        %v1419 = vunpack.c.l.b16 %v1381
        %v1420 = vunpack.c.h.b16 %v1381
        %v1421 = vunpack.c.l.b16 %v1382
        %v1422 = vunpack.c.h.b16 %v1382
        %v1423 = vunpack.c.l.b16 %v1383
        %v1424 = vunpack.c.h.b16 %v1383
        %v1425 = vunpack.c.l.b16 %v1384
        %v1426 = vunpack.c.h.b16 %v1384
        %v1427 = vunpack.c.l.b16 %v1385
        %v1428 = vunpack.c.h.b16 %v1385
        %v1429 = vunpack.c.l.b16 %v1386
        %v1430 = vunpack.c.h.b16 %v1386
        %v1431 = vunpack.c.l.b16 %v1387
        %v1432 = vunpack.c.h.b16 %v1387
        %v1433 = vunpack.c.l.b16 %v1388
        %v1434 = vunpack.c.h.b16 %v1388
        %v1435 = vunpack.c.l.b16 %v1389
        %v1436 = vunpack.c.h.b16 %v1389
        %v1437 = vunpack.c.l.b16 %v1390
        %v1438 = vunpack.c.h.b16 %v1390
        %v1439 = vpack.c.b16 %v1407, %v1407
        %v1440 = vpack.c.b16 %v1408, %v1408
        %v1441 = vpack.c.b16 %v1409, %v1409
        %v1442 = vpack.c.b16 %v1410, %v1410
        %v1443 = vpack.c.b16 %v1411, %v1411
        %v1444 = vpack.c.b16 %v1412, %v1412
        %v1445 = vpack.c.b16 %v1413, %v1413
        %v1446 = vpack.c.b16 %v1414, %v1414
        %v1447 = vpack.c.b16 %v1415, %v1415
        %v1448 = vpack.c.b16 %v1416, %v1416
        %v1449 = vpack.c.b16 %v1417, %v1417
        %v1450 = vpack.c.b16 %v1418, %v1418
        %v1451 = vpack.c.b16 %v1419, %v1419
        %v1452 = vpack.c.b16 %v1420, %v1420
        %v1453 = vpack.c.b16 %v1421, %v1421
        %v1454 = vpack.c.b16 %v1422, %v1422
        %v1455 = vpack.c.b16 %v1423, %v1423
        %v1456 = vpack.c.b16 %v1424, %v1424
        %v1457 = vpack.c.b16 %v1425, %v1425
        %v1458 = vpack.c.b16 %v1426, %v1426
        %v1459 = vpack.c.b16 %v1427, %v1427
        %v1460 = vpack.c.b16 %v1428, %v1428
        %v1461 = vpack.c.b16 %v1429, %v1429
        %v1462 = vpack.c.b16 %v1430, %v1430
        %v1463 = vpack.c.b16 %v1431, %v1431
        %v1464 = vpack.c.b16 %v1432, %v1432
        %v1465 = vpack.c.b16 %v1433, %v1433
        %v1466 = vpack.c.b16 %v1434, %v1434
        %v1467 = vpack.c.b16 %v1435, %v1435
        %v1468 = vpack.c.b16 %v1436, %v1436
        %v1469 = vpack.c.b16 %v1437, %v1437
        %v1470 = vpack.c.b16 %v1438, %v1438
        %1503 = vst [vmem:[%s427] sm:$0xf] %v1439
        %1504 = vst [vmem:[%s427 + $0x4] sm:$0xf] %v1440
        %1505 = vst [vmem:[%s427 + $0x8] sm:$0xf] %v1441
        %1506 = vst [vmem:[%s427 + $0xc] sm:$0xf] %v1442
        %1507 = vst [vmem:[%s427 + $0x10] sm:$0xf] %v1443
        %1508 = vst [vmem:[%s427 + $0x14] sm:$0xf] %v1444
        %1509 = vst [vmem:[%s427 + $0x18] sm:$0xf] %v1445
        %1510 = vst [vmem:[%s427 + $0x1c] sm:$0xf] %v1446
        %1511 = vst [vmem:[%s427 + $0x20] sm:$0xf] %v1447
        %1512 = vst [vmem:[%s427 + $0x24] sm:$0xf] %v1448
        %1513 = vst [vmem:[%s427 + $0x28] sm:$0xf] %v1449
        %1514 = vst [vmem:[%s427 + $0x2c] sm:$0xf] %v1450
        %1515 = vst [vmem:[%s427 + $0x30] sm:$0xf] %v1451
        %1516 = vst [vmem:[%s427 + $0x34] sm:$0xf] %v1452
        %1517 = vst [vmem:[%s427 + $0x38] sm:$0xf] %v1453
        %1518 = vst [vmem:[%s427 + $0x3c] sm:$0xf] %v1454
        %1519 = vst [vmem:[%s427 + $0x40] sm:$0xf] %v1455
        %1520 = vst [vmem:[%s427 + $0x44] sm:$0xf] %v1456
        %1521 = vst [vmem:[%s427 + $0x48] sm:$0xf] %v1457
        %1522 = vst [vmem:[%s427 + $0x4c] sm:$0xf] %v1458
        %1523 = vst [vmem:[%s427 + $0x50] sm:$0xf] %v1459
        %1524 = vst [vmem:[%s427 + $0x54] sm:$0xf] %v1460
        %1525 = vst [vmem:[%s427 + $0x58] sm:$0xf] %v1461
        %1526 = vst [vmem:[%s427 + $0x5c] sm:$0xf] %v1462
        %1527 = vst [vmem:[%s427 + $0x60] sm:$0xf] %v1463
        %1528 = vst [vmem:[%s427 + $0x64] sm:$0xf] %v1464
        %1529 = vst [vmem:[%s427 + $0x68] sm:$0xf] %v1465
        %1530 = vst [vmem:[%s427 + $0x6c] sm:$0xf] %v1466
        %1531 = vst [vmem:[%s427 + $0x70] sm:$0xf] %v1467
        %1532 = vst [vmem:[%s427 + $0x74] sm:$0xf] %v1468
        %1533 = vst [vmem:[%s427 + $0x78] sm:$0xf] %v1469
        %1534 = vst [vmem:[%s427 + $0x7c] sm:$0xf] %v1470
        %v1535 = vpack.c.bf16 %v1062, %v1057
        %v1536 = vpack.c.bf16 %v1072, %v1067
        %v1537 = vpack.c.bf16 %v1082, %v1077
        %v1538 = vpack.c.bf16 %v1092, %v1087
        %v1539 = vpack.c.bf16 %v1102, %v1097
        %v1540 = vpack.c.bf16 %v1112, %v1107
        %v1541 = vpack.c.bf16 %v1122, %v1117
        %v1542 = vpack.c.bf16 %v1132, %v1127
        %v1543 = vpack.c.bf16 %v1142, %v1137
        %v1544 = vpack.c.bf16 %v1152, %v1147
        %v1545 = vpack.c.bf16 %v1162, %v1157
        %v1546 = vpack.c.bf16 %v1172, %v1167
        %v1547 = vpack.c.bf16 %v1182, %v1177
        %v1548 = vpack.c.bf16 %v1192, %v1187
        %v1549 = vpack.c.bf16 %v1202, %v1197
        %v1550 = vpack.c.bf16 %v1212, %v1207
        %v1567 = vunpack.c.l.b16 %v1535
        %v1568 = vunpack.c.h.b16 %v1535
        %v1569 = vunpack.c.l.b16 %v1536
        %v1570 = vunpack.c.h.b16 %v1536
        %v1571 = vunpack.c.l.b16 %v1537
        %v1572 = vunpack.c.h.b16 %v1537
        %v1573 = vunpack.c.l.b16 %v1538
        %v1574 = vunpack.c.h.b16 %v1538
        %v1575 = vunpack.c.l.b16 %v1539
        %v1576 = vunpack.c.h.b16 %v1539
        %v1577 = vunpack.c.l.b16 %v1540
        %v1578 = vunpack.c.h.b16 %v1540
        %v1579 = vunpack.c.l.b16 %v1541
        %v1580 = vunpack.c.h.b16 %v1541
        %v1581 = vunpack.c.l.b16 %v1542
        %v1582 = vunpack.c.h.b16 %v1542
        %v1583 = vunpack.c.l.b16 %v1543
        %v1584 = vunpack.c.h.b16 %v1543
        %v1585 = vunpack.c.l.b16 %v1544
        %v1586 = vunpack.c.h.b16 %v1544
        %v1587 = vunpack.c.l.b16 %v1545
        %v1588 = vunpack.c.h.b16 %v1545
        %v1589 = vunpack.c.l.b16 %v1546
        %v1590 = vunpack.c.h.b16 %v1546
        %v1591 = vunpack.c.l.b16 %v1547
        %v1592 = vunpack.c.h.b16 %v1547
        %v1593 = vunpack.c.l.b16 %v1548
        %v1594 = vunpack.c.h.b16 %v1548
        %v1595 = vunpack.c.l.b16 %v1549
        %v1596 = vunpack.c.h.b16 %v1549
        %v1597 = vunpack.c.l.b16 %v1550
        %v1598 = vunpack.c.h.b16 %v1550
        %v1599 = vpack.c.b16 %v1567, %v1567
        %v1600 = vpack.c.b16 %v1568, %v1568
        %v1601 = vpack.c.b16 %v1569, %v1569
        %v1602 = vpack.c.b16 %v1570, %v1570
        %v1603 = vpack.c.b16 %v1571, %v1571
        %v1604 = vpack.c.b16 %v1572, %v1572
        %v1605 = vpack.c.b16 %v1573, %v1573
        %v1606 = vpack.c.b16 %v1574, %v1574
        %v1607 = vpack.c.b16 %v1575, %v1575
        %v1608 = vpack.c.b16 %v1576, %v1576
        %v1609 = vpack.c.b16 %v1577, %v1577
        %v1610 = vpack.c.b16 %v1578, %v1578
        %v1611 = vpack.c.b16 %v1579, %v1579
        %v1612 = vpack.c.b16 %v1580, %v1580
        %v1613 = vpack.c.b16 %v1581, %v1581
        %v1614 = vpack.c.b16 %v1582, %v1582
        %v1615 = vpack.c.b16 %v1583, %v1583
        %v1616 = vpack.c.b16 %v1584, %v1584
        %v1617 = vpack.c.b16 %v1585, %v1585
        %v1618 = vpack.c.b16 %v1586, %v1586
        %v1619 = vpack.c.b16 %v1587, %v1587
        %v1620 = vpack.c.b16 %v1588, %v1588
        %v1621 = vpack.c.b16 %v1589, %v1589
        %v1622 = vpack.c.b16 %v1590, %v1590
        %v1623 = vpack.c.b16 %v1591, %v1591
        %v1624 = vpack.c.b16 %v1592, %v1592
        %v1625 = vpack.c.b16 %v1593, %v1593
        %v1626 = vpack.c.b16 %v1594, %v1594
        %v1627 = vpack.c.b16 %v1595, %v1595
        %v1628 = vpack.c.b16 %v1596, %v1596
        %v1629 = vpack.c.b16 %v1597, %v1597
        %v1630 = vpack.c.b16 %v1598, %v1598
        %1663 = vst [vmem:[%s434] sm:$0xf] %v1599
        %1664 = vst [vmem:[%s434 + $0x4] sm:$0xf] %v1600
        %1665 = vst [vmem:[%s434 + $0x8] sm:$0xf] %v1601
        %1666 = vst [vmem:[%s434 + $0xc] sm:$0xf] %v1602
        %1667 = vst [vmem:[%s434 + $0x10] sm:$0xf] %v1603
        %1668 = vst [vmem:[%s434 + $0x14] sm:$0xf] %v1604
        %1669 = vst [vmem:[%s434 + $0x18] sm:$0xf] %v1605
        %1670 = vst [vmem:[%s434 + $0x1c] sm:$0xf] %v1606
        %1671 = vst [vmem:[%s434 + $0x20] sm:$0xf] %v1607
        %1672 = vst [vmem:[%s434 + $0x24] sm:$0xf] %v1608
        %1673 = vst [vmem:[%s434 + $0x28] sm:$0xf] %v1609
        %1674 = vst [vmem:[%s434 + $0x2c] sm:$0xf] %v1610
        %1675 = vst [vmem:[%s434 + $0x30] sm:$0xf] %v1611
        %1676 = vst [vmem:[%s434 + $0x34] sm:$0xf] %v1612
        %1677 = vst [vmem:[%s434 + $0x38] sm:$0xf] %v1613
        %1678 = vst [vmem:[%s434 + $0x3c] sm:$0xf] %v1614
        %1679 = vst [vmem:[%s434 + $0x40] sm:$0xf] %v1615
        %1680 = vst [vmem:[%s434 + $0x44] sm:$0xf] %v1616
        %1681 = vst [vmem:[%s434 + $0x48] sm:$0xf] %v1617
        %1682 = vst [vmem:[%s434 + $0x4c] sm:$0xf] %v1618
        %1683 = vst [vmem:[%s434 + $0x50] sm:$0xf] %v1619
        %1684 = vst [vmem:[%s434 + $0x54] sm:$0xf] %v1620
        %1685 = vst [vmem:[%s434 + $0x58] sm:$0xf] %v1621
        %1686 = vst [vmem:[%s434 + $0x5c] sm:$0xf] %v1622
        %1687 = vst [vmem:[%s434 + $0x60] sm:$0xf] %v1623
        %1688 = vst [vmem:[%s434 + $0x64] sm:$0xf] %v1624
        %1689 = vst [vmem:[%s434 + $0x68] sm:$0xf] %v1625
        %1690 = vst [vmem:[%s434 + $0x6c] sm:$0xf] %v1626
        %1691 = vst [vmem:[%s434 + $0x70] sm:$0xf] %v1627
        %1692 = vst [vmem:[%s434 + $0x74] sm:$0xf] %v1628
        %1693 = vst [vmem:[%s434 + $0x78] sm:$0xf] %v1629
        %1694 = vst [vmem:[%s434 + $0x7c] sm:$0xf] %v1630
        %s1695 = sand.u32 %s208, 1
        %s1696 = scalar_lea.sflag [#allocation4], %s1695
        %s1697 = sand.u32 %s208, 1
        %s1698 = smul.addr %s1697, 128
        %s1699 = scalar_lea.vmem [#allocation10], %s1698
        %s1700 = sand.u32 %s32, 1
        %s1701 = scalar_lea.sflag [#allocation12], %s1700
        %s1702 = sand.u32 %s236, 1
        %s1703 = smul.addr %s1702, 128
        %s1704 = scalar_lea.vmem [#allocation11], %s1703
        %s1705 = sand.u32 %s32, 1
        %s1706 = scalar_lea.sflag [#allocation12], %s1705
        %s1707 = sand.u32 %s264, 1
        %s1708 = smul.addr %s1707, 128
        %s1709 = scalar_lea.vmem [#allocation13], %s1708
        // Predicated region
        $region65: #{tpu_custom_call.1} parent=47 // pred_check
          %p1710 = pneg %p218
        $region66: #{tpu_custom_call.1} parent=47 // pred_check_branch
          %1712 = sbr.rel (%p1710) target = $region68
        $region67: #{tpu_custom_call.1} parent=47 // pred_region
          %s1713 = smul.u32 32, %s37
          %s1715 = ssub.s32 2048, 2048
          %1716 = vsyncadd %s1696, %s1715
          %s1717 = smul.addr %s36, 64
          %s1718 = sadd.s32 %s1713, %s1717
          %s1719 = smul.addr %s1718, 64
          %s1720 = scalar_lea.hbm %s7, %s1719
          %s1721 = sshll.u32 %s1699, 4
          %s1722 = int_to_ptr.vmem [resolvable:$true] %s1721
          %1727 = dma.vmem_to_hbm [thread:$0]  %s1722, 2048, %s1720, %s1696, 64, 64, 4
        $region68: #{tpu_custom_call.1} parent=47 // pred_fallthru
          _
        // Predicated region
        $region69: #{tpu_custom_call.1} parent=47 // pred_check
          %p1728 = pneg %p246
        $region70: #{tpu_custom_call.1} parent=47 // pred_check_branch
          %1730 = sbr.rel (%p1728) target = $region72
        $region71: #{tpu_custom_call.1} parent=47 // pred_region
          %s1731 = smul.u32 32, %s37
          %s1733 = ssub.s32 2048, 2048
          %1734 = vsyncadd %s1701, %s1733
          %s1735 = smul.addr %s36, 64
          %s1736 = sadd.s32 %s1731, %s1735
          %s1737 = smul.addr %s1736, 64
          %s1738 = scalar_lea.hbm %s8, %s1737
          %s1739 = sshll.u32 %s1704, 4
          %s1740 = int_to_ptr.vmem [resolvable:$true] %s1739
          %1745 = dma.vmem_to_hbm [thread:$0]  %s1740, 2048, %s1738, %s1701, 64, 64, 4
        $region72: #{tpu_custom_call.1} parent=47 // pred_fallthru
          _
        // Predicated region
        $region73: #{tpu_custom_call.1} parent=47 // pred_check
          %p1746 = pneg %p274
        $region74: #{tpu_custom_call.1} parent=47 // pred_check_branch
          %1748 = sbr.rel (%p1746) target = $region76
        $region75: #{tpu_custom_call.1} parent=47 // pred_region
          %s1749 = smul.u32 32, %s37
          %s1751 = ssub.s32 2048, 2048
          %1752 = vsyncadd %s1706, %s1751
          %s1753 = smul.addr %s36, 64
          %s1754 = sadd.s32 %s1749, %s1753
          %s1755 = smul.addr %s1754, 64
          %s1756 = scalar_lea.hbm %s9, %s1755
          %s1757 = sshll.u32 %s1709, 4
          %s1758 = int_to_ptr.vmem [resolvable:$true] %s1757
          %1763 = dma.vmem_to_hbm [thread:$0]  %s1758, 2048, %s1756, %s1706, 64, 64, 4
        $region76: #{tpu_custom_call.1} parent=47 // pred_fallthru
          _
      $region48: #{tpu_custom_call.1} parent=5 // pred_fallthru
        _
      %p1764 = scmp.le.s32.totalorder 2, %s27
      // Predicated region
      $region77: #{tpu_custom_call.1} parent=5 // pred_check
        %p1765 = pneg %p1764
      $region78: #{tpu_custom_call.1} parent=5 // pred_check_branch
        %1767 = sbr.rel (%p1765) target = $region80
      $region79: #{tpu_custom_call.1} parent=5 // pred_region
        %s1768 = ssub.s32 %s27, 2
        // Predicated region
        $region81: #{tpu_custom_call.1} parent=79 // pred_check
          %p1769 = pneg %p224
        $region82: #{tpu_custom_call.1} parent=79 // pred_check_branch
          %1771 = sbr.rel (%p1769) target = $region84
        $region83: #{tpu_custom_call.1} parent=79 // pred_region
          %s1772 = sand.u32 %s209, 1
          %s1773 = scalar_lea.sflag [#allocation4], %s1772
          %s1774 = sand.u32 %s209, 1
          %s1775 = smul.addr %s1774, 128
          %s1776 = scalar_lea.vmem [#allocation10], %s1775
          %1777 = dma.done %s1773, 2048
        $region84: #{tpu_custom_call.1} parent=79 // pred_fallthru
          _
        // Predicated region
        $region85: #{tpu_custom_call.1} parent=79 // pred_check
          %p1778 = pneg %p252
        $region86: #{tpu_custom_call.1} parent=79 // pred_check_branch
          %1780 = sbr.rel (%p1778) target = $region88
        $region87: #{tpu_custom_call.1} parent=79 // pred_region
          %s1781 = sand.u32 %s33, 1
          %s1782 = scalar_lea.sflag [#allocation12], %s1781
          %s1783 = sand.u32 %s237, 1
          %s1784 = smul.addr %s1783, 128
          %s1785 = scalar_lea.vmem [#allocation11], %s1784
          %1786 = dma.done %s1782, 2048
        $region88: #{tpu_custom_call.1} parent=79 // pred_fallthru
          _
        // Predicated region
        $region89: #{tpu_custom_call.1} parent=79 // pred_check
          %p1787 = pneg %p280
        $region90: #{tpu_custom_call.1} parent=79 // pred_check_branch
          %1789 = sbr.rel (%p1787) target = $region92
        $region91: #{tpu_custom_call.1} parent=79 // pred_region
          %s1790 = sand.u32 %s33, 1
          %s1791 = scalar_lea.sflag [#allocation12], %s1790
          %s1792 = sand.u32 %s265, 1
          %s1793 = smul.addr %s1792, 128
          %s1794 = scalar_lea.vmem [#allocation13], %s1793
          %1795 = dma.done %s1791, 2048
        $region92: #{tpu_custom_call.1} parent=79 // pred_fallthru
          _
      $region80: #{tpu_custom_call.1} parent=5 // pred_fallthru
        _
    $region6: #{tpu_custom_call.1} parent=1 // loop_footer
      %s31 = sadd.s32 1, %s27
    $region7: #{tpu_custom_call.1} parent=1 // loop_footer_branch
      %26 = sbr.rel target = $region3
    $region8: #{tpu_custom_call.1} parent=1 // loop_exit
      _
    %1796 = vsyncpa [#allocation3], 1
    %s1797 = scalar_lea.sflag [#allocation3], 1
    %1798 = vsyncpa %s1797, 1
    %1799 = vsyncpa [#allocation6], 1
    %1800 = vsyncpa [#allocation9], 1
    %1801 = vsyncpa [#allocation4], 1
    %s1802 = scalar_lea.sflag [#allocation4], 1
    %1803 = vsyncpa %s1802, 1
    %1804 = vsyncpa [#allocation12], 1
    %s1805 = scalar_lea.sflag [#allocation12], 1
    %1806 = vsyncpa %s1805, 1

</llo_original>
